<compile_context>
chip_gen: v7x
topology: tpu7x:2x2x1
jax: 0.10.0
libtpu: 0.0.40
codegen_flags: <defaults>
</compile_context>

<pallas_src>
import functools
import math

import jax
import jax.numpy as jnp
from jax.experimental import pallas as pl
from jax.experimental.pallas import tpu as pltpu


def _output_proj_kernel(H, W, Bt, lpad, x_hbm, w_ref, b_ref, o_ref, xpad_ref, sem):
    # x_hbm   : (B, Cin, H*W)     full activation, left in HBM (pl.ANY)
    # w_ref   : (9, Cpad, Cin)    one (Cpad, Cin) matrix per 3x3 tap (VMEM)
    # b_ref   : (Cpad, 1)         bias, zero rows past Cout (VMEM)
    # o_ref   : (Bt, Cout, H*W)   lane-dense output block for this grid step
    # xpad_ref: (n_slots, Cin, lpad + H*W + rpad)  zero-halo scratch (x dtype)
    # sem     : (n_slots,)        DMA completion semaphores
    HW = H * W
    n_slots, cin, scratch_w = xpad_ref.shape
    cpad = w_ref.shape[1]
    Cout = o_ref.shape[1]
    b0 = pl.program_id(0) * Bt

    def dma(i, slot):
        return pltpu.make_async_copy(
            x_hbm.at[b0 + i],
            xpad_ref.at[slot, :, pl.ds(lpad, HW)],
            sem.at[slot])

    # Kick off the first image's HBM->scratch copy immediately; halo zeroing
    # and mask construction below overlap with the in-flight DMA.
    dma(0, 0).start()

    # Zero only the lane-aligned halo strips (128 columns each side); the
    # interior is completely overwritten by the per-image DMA.
    zeros_l = jnp.zeros((cin, lpad), xpad_ref.dtype)
    zeros_r = jnp.zeros((cin, scratch_w - lpad - HW), xpad_ref.dtype)
    for s in range(n_slots):
        xpad_ref[s, :, 0:lpad] = zeros_l
        xpad_ref[s, :, lpad + HW:] = zeros_r

    # Horizontal wrap-around masks, applied per image to the small (Cpad, HW)
    # per-dx accumulators instead of the (Cin, HW) slabs.
    col = jax.lax.broadcasted_iota(jnp.int32, (cpad, HW), 1) % W
    mask_l = (col >= 1).astype(jnp.float32)        # dx = -1 contribution valid
    mask_r = (col <= W - 2).astype(jnp.float32)    # dx = +1 contribution valid

    # Bias broadcast hoisted out of the per-image loop.
    bias_hw = jnp.broadcast_to(b_ref[...].astype(jnp.float32), (cpad, HW))

    for i in range(Bt):                            # static, small
        slot = i % n_slots
        if i + 1 < Bt:                             # prefetch next image's DMA
            dma(i + 1, (i + 1) % n_slots).start()
        dma(i, slot).wait()

        acc_l = jnp.zeros((cpad, HW), jnp.float32)
        acc_c = jnp.zeros((cpad, HW), jnp.float32)
        acc_r = jnp.zeros((cpad, HW), jnp.float32)

        # 3x3 conv = 9 small MXU matmuls, f32 accumulation, grouped by dx so
        # the wrap masking happens once on the outputs.
        k = 0
        for dy in (-1, 0, 1):
            for dx in (-1, 0, 1):
                start = lpad + dy * W + dx                       # static offset
                slab = xpad_ref[slot, :, start:start + HW]       # (Cin, HW)
                t = jnp.dot(w_ref[k], slab,
                            preferred_element_type=jnp.float32)
                if dx == -1:
                    acc_l = acc_l + t
                elif dx == 1:
                    acc_r = acc_r + t
                else:
                    acc_c = acc_c + t
                k += 1

        acc = bias_hw + acc_c + acc_l * mask_l + acc_r * mask_r
        # act_layer / norm_layer are None in the default OutputProj config.
        o_ref[i] = acc[:Cout].astype(o_ref.dtype)


def _pick_images_per_step(B):
    """Images per grid step: amortize ~0.35us per-step overhead, but keep the
    grid at >= 2 'parallel' steps whenever B >= 2 (both v7x TensorCores)."""
    if B <= 1:
        return 1
    target = max(1, min(8, B // 2))
    for bt in range(target, 0, -1):
        if B % bt == 0:
            return bt
    return 1


def output_proj(x_blc, w_oihw, bias):
    """OutputProj.forward: x (B, L, Cin) -> (B, Cout, H, W)."""
    B, L, Cin = x_blc.shape
    H = int(math.sqrt(L))
    W = H
    assert H * W == L, "L must be a perfect square"
    Cout, Cin_w, KH, KW = w_oihw.shape
    assert Cin_w == Cin and (KH, KW) == (3, 3)
    HW = H * W

    Bt = _pick_images_per_step(B)
    steps = B // Bt
    n_slots = min(2, Bt)

    # Layout glue (exactly the module's own x.transpose(1, 2)): channels-major,
    # flattened spatial in the lane dimension.  Stays in HBM and is DMA'd per
    # image into the padded scratch interior (DMA cannot cast, so scratch dtype
    # matches the activation dtype).
    x_t = jnp.transpose(x_blc, (0, 2, 1))                        # (B, Cin, HW)

    # Weights: one (Cout, Cin) matrix per 3x3 tap, Cout zero-padded to a
    # sublane multiple, kept in the activation dtype (bf16 inputs -> native
    # bf16 MXU path, f32 accumulation).  Bias as an f32 (Cpad, 1) column.
    cpad = max(8, ((Cout + 7) // 8) * 8)
    w_taps = jnp.transpose(w_oihw, (2, 3, 0, 1)).reshape(KH * KW, Cout, Cin)
    w_taps = jnp.pad(w_taps, ((0, 0), (0, cpad - Cout), (0, 0))).astype(x_t.dtype)
    b2d = jnp.pad(bias.reshape(Cout, 1).astype(jnp.float32),
                  ((0, cpad - Cout), (0, 0)))

    # Lane-aligned (128-wide) zero halo on both sides of the flattened image.
    lpad = ((W + 1 + 127) // 128) * 128
    rpad = ((W + 1 + 127) // 128) * 128
    scratch_w = lpad + HW + rpad

    out_flat = pl.pallas_call(
        functools.partial(_output_proj_kernel, H, W, Bt, lpad),
        out_shape=jax.ShapeDtypeStruct((B, Cout, HW), x_blc.dtype),
        grid_spec=pltpu.PrefetchScalarGridSpec(
            num_scalar_prefetch=0,
            grid=(steps,),
            in_specs=[
                pl.BlockSpec(memory_space=pl.ANY),                  # x stays in HBM
                pl.BlockSpec((KH * KW, cpad, Cin), lambda g: (0, 0, 0)),
                pl.BlockSpec((cpad, 1), lambda g: (0, 0)),
            ],
            out_specs=pl.BlockSpec((Bt, Cout, HW), lambda g: (g, 0, 0)),
            scratch_shapes=[
                pltpu.VMEM((n_slots, Cin, scratch_w), x_t.dtype),
                pltpu.SemaphoreType.DMA((n_slots,)),
            ],
        ),
        compiler_params=pltpu.CompilerParams(
            dimension_semantics=("parallel",),
            vmem_limit_bytes=32 * 1024 * 1024),
    )(x_t, w_taps, b2d)

    # (B, Cout, H*W) -> (B, Cout, H, W): free reshape to the NCHW output.
    return out_flat.reshape(B, Cout, H, W)


def _reference(x_blc, w_oihw, bias):
    B, L, Cin = x_blc.shape
    H = W = int(math.sqrt(L))
    x_nchw = jnp.transpose(x_blc, (0, 2, 1)).reshape(B, Cin, H, W)
    y = jax.lax.conv_general_dilated(
        x_nchw, w_oihw, window_strides=(1, 1), padding="SAME",
        dimension_numbers=("NCHW", "OIHW", "NCHW"))
    return y + bias.reshape(1, -1, 1, 1)


if __name__ == "__main__":
    B, Cin, Cout, H, W = 2, 64, 3, 16, 16
    L = H * W

    key = jax.random.PRNGKey(0)
    kw, kb, kx = jax.random.split(key, 3)

    # Deterministic init mimicking nn.Conv2d default (uniform +- 1/sqrt(fan_in)).
    fan_in = Cin * 3 * 3
    bound = 1.0 / math.sqrt(fan_in)
    w_oihw = jax.random.uniform(kw, (Cout, Cin, 3, 3), jnp.float32,
                                minval=-bound, maxval=bound)
    bias = jax.random.uniform(kb, (Cout,), jnp.float32,
                              minval=-bound, maxval=bound)
    x = jax.random.normal(kx, (B, L, Cin), jnp.float32)

    out = output_proj(x, w_oihw, bias)
    out = jax.block_until_ready(out)

    ref = _reference(x, w_oihw, bias)
    assert out.shape == (B, Cout, H, W), out.shape
    assert jnp.allclose(out, ref, atol=1e-4, rtol=1e-4), \
        float(jnp.max(jnp.abs(out - ref)))

    print("KERNEL_OK")
</pallas_src>

<mosaic_0001>
module attributes {stable_mosaic.version = 11 : i64} {
  func.func @_output_proj_kernel(%arg0: i32, %arg1: memref<2x64x256xf32, #tpu.memory_space<any>>, %arg2: memref<9x8x64xf32, #tpu.memory_space<vmem>>, %arg3: memref<8x1xf32, #tpu.memory_space<vmem>>, %arg4: memref<1x3x256xf32, #tpu.memory_space<vmem>>, %arg5: memref<1x64x512xf32, #tpu.memory_space<vmem>>, %arg6: memref<1x!tpu.dma_semaphore, #tpu.memory_space<semaphore_mem>>) attributes {dimension_semantics = [#tpu.dimension_semantics<parallel>], iteration_bounds = array<i64: 2>, scalar_prefetch = 0 : i64, scratch_operands = 2 : i64, tpu.core_type = #tpu.core_type<tc>, window_params = [{}, {pipeline_mode = #tpu.pipeline_mode<synchronous>, transform_indices = @transform_1, window_bounds = array<i64: 9, 8, 64>}, {pipeline_mode = #tpu.pipeline_mode<synchronous>, transform_indices = @transform_2, window_bounds = array<i64: 8, 1>}, {transform_indices = @transform_3, window_bounds = array<i64: 1, 3, 256>}]} {
    %c1_i32 = arith.constant 1 : i32
    %0 = arith.muli %arg0, %c1_i32 : i32
    %c0_i32 = arith.constant 0 : i32
    %1 = arith.addi %0, %c0_i32 : i32
    %c0_i32_0 = arith.constant 0 : i32
    %c0_i32_1 = arith.constant 0 : i32
    %c0_i32_2 = arith.constant 0 : i32
    %c0_i32_3 = arith.constant 0 : i32
    %2 = tpu.memref_slice %arg1[%1, %c0_i32_2, %c0_i32_3] : memref<2x64x256xf32, #tpu.memory_space<any>> -> memref<1x64x256xf32, #tpu.memory_space<any>>
    %3 = tpu.memref_squeeze %2 : memref<1x64x256xf32, #tpu.memory_space<any>> -> memref<64x256xf32, #tpu.memory_space<any>>
    %c0_i32_4 = arith.constant 0 : i32
    %c128_i32 = arith.constant 128 : i32
    %4 = tpu.memref_slice %arg5[%c0_i32_0, %c0_i32_4, %c128_i32] : memref<1x64x512xf32, #tpu.memory_space<vmem>> -> memref<1x64x256xf32, #tpu.memory_space<vmem>>
    %5 = tpu.memref_squeeze %4 : memref<1x64x256xf32, #tpu.memory_space<vmem>> -> memref<64x256xf32, #tpu.memory_space<vmem>>
    %6 = tpu.memref_slice %arg6[%c0_i32_1] : memref<1x!tpu.dma_semaphore, #tpu.memory_space<semaphore_mem>> -> memref<1x!tpu.dma_semaphore, #tpu.memory_space<semaphore_mem>>
    %7 = tpu.memref_squeeze %6 : memref<1x!tpu.dma_semaphore, #tpu.memory_space<semaphore_mem>> -> memref<!tpu.dma_semaphore, #tpu.memory_space<semaphore_mem>>
    tpu.enqueue_dma source(%3 : memref<64x256xf32, #tpu.memory_space<any>>) target(%5 : memref<64x256xf32, #tpu.memory_space<vmem>>) target_semaphore(%7 : memref<!tpu.dma_semaphore, #tpu.memory_space<semaphore_mem>>)
    %cst = arith.constant 0.000000e+00 : f32
    %8 = vector.broadcast %cst : f32 to vector<64x128xf32>
    %cst_5 = arith.constant 0.000000e+00 : f32
    %9 = vector.broadcast %cst_5 : f32 to vector<64x128xf32>
    %c0 = arith.constant 0 : index
    %c0_6 = arith.constant 0 : index
    %c0_7 = arith.constant 0 : index
    %10 = vector.load %arg5[%c0, %c0_6, %c0_7] : memref<1x64x512xf32, #tpu.memory_space<vmem>>, vector<1x64x128xf32>
    %11 = vector.shape_cast %10 : vector<1x64x128xf32> to vector<64x128xf32>
    %12 = vector.shape_cast %8 : vector<64x128xf32> to vector<1x64x128xf32>
    tpu.vector_store %arg5[%c0, %c0_6, %c0_7], %12 {strides = array<i32>} : memref<1x64x512xf32, #tpu.memory_space<vmem>>, vector<1x64x128xf32>,
    %c0_8 = arith.constant 0 : index
    %c0_9 = arith.constant 0 : index
    %c384 = arith.constant 384 : index
    %13 = vector.load %arg5[%c0_8, %c0_9, %c384] : memref<1x64x512xf32, #tpu.memory_space<vmem>>, vector<1x64x128xf32>
    %14 = vector.shape_cast %13 : vector<1x64x128xf32> to vector<64x128xf32>
    %15 = vector.shape_cast %9 : vector<64x128xf32> to vector<1x64x128xf32>
    tpu.vector_store %arg5[%c0_8, %c0_9, %c384], %15 {strides = array<i32>} : memref<1x64x512xf32, #tpu.memory_space<vmem>>, vector<1x64x128xf32>,
    %16 = tpu.iota {dimensions = array<i32: 1>} : vector<8x256xi32>
    %c16_i32 = arith.constant 16 : i32
    %c0_i32_10 = arith.constant 0 : i32
    %17 = arith.cmpi eq, %c16_i32, %c0_i32_10 : i32
    %c1_i32_11 = arith.constant 1 : i32
    %18 = arith.select %17, %c1_i32_11, %c16_i32 : i32
    %19 = vector.broadcast %18 : i32 to vector<8x256xi32>
    %20 = arith.remsi %16, %19 : vector<8x256xi32>
    %c0_i32_12 = arith.constant 0 : i32
    %21 = vector.broadcast %c0_i32_12 : i32 to vector<8x256xi32>
    %22 = arith.cmpi ne, %20, %21 : vector<8x256xi32>
    %c0_i32_13 = arith.constant 0 : i32
    %23 = vector.broadcast %c0_i32_13 : i32 to vector<8x256xi32>
    %24 = arith.cmpi slt, %20, %23 : vector<8x256xi32>
    %c0_i32_14 = arith.constant 0 : i32
    %25 = arith.cmpi slt, %18, %c0_i32_14 : i32
    %26 = vector.broadcast %25 : i1 to vector<8x256xi1>
    %27 = vector.broadcast %26 : vector<8x256xi1> to vector<8x256xi1>
    %28 = arith.xori %24, %27 : vector<8x256xi1>
    %29 = arith.andi %28, %22 : vector<8x256xi1>
    %30 = vector.broadcast %18 : i32 to vector<8x256xi32>
    %31 = arith.addi %20, %30 : vector<8x256xi32>
    %32 = arith.select %29, %31, %20 : vector<8x256xi1>, vector<8x256xi32>
    %c1_i32_15 = arith.constant 1 : i32
    %33 = vector.broadcast %c1_i32_15 : i32 to vector<8x256xi32>
    %34 = arith.cmpi sge, %32, %33 : vector<8x256xi32>
    %35 = arith.extui %34 : vector<8x256xi1> to vector<8x256xi32>
    %36 = arith.sitofp %35 : vector<8x256xi32> to vector<8x256xf32>
    %c14_i32 = arith.constant 14 : i32
    %37 = vector.broadcast %c14_i32 : i32 to vector<8x256xi32>
    %38 = arith.cmpi sle, %32, %37 : vector<8x256xi32>
    %39 = arith.extui %38 : vector<8x256xi1> to vector<8x256xi32>
    %40 = arith.sitofp %39 : vector<8x256xi32> to vector<8x256xf32>
    %c0_16 = arith.constant 0 : index
    %c0_17 = arith.constant 0 : index
    %41 = vector.load %arg3[%c0_16, %c0_17] : memref<8x1xf32, #tpu.memory_space<vmem>>, vector<8x1xf32>
    %42 = vector.shape_cast %41 : vector<8x1xf32> to vector<8x1xf32>
    %43 = vector.broadcast %42 : vector<8x1xf32> to vector<8x256xf32>
    %c0_i32_18 = arith.constant 0 : i32
    %44 = arith.addi %0, %c0_i32_18 : i32
    %c0_i32_19 = arith.constant 0 : i32
    %c0_i32_20 = arith.constant 0 : i32
    %c0_i32_21 = arith.constant 0 : i32
    %c0_i32_22 = arith.constant 0 : i32
    %45 = tpu.memref_slice %arg1[%44, %c0_i32_21, %c0_i32_22] : memref<2x64x256xf32, #tpu.memory_space<any>> -> memref<1x64x256xf32, #tpu.memory_space<any>>
    %46 = tpu.memref_squeeze %45 : memref<1x64x256xf32, #tpu.memory_space<any>> -> memref<64x256xf32, #tpu.memory_space<any>>
    %c0_i32_23 = arith.constant 0 : i32
    %c128_i32_24 = arith.constant 128 : i32
    %47 = tpu.memref_slice %arg5[%c0_i32_19, %c0_i32_23, %c128_i32_24] : memref<1x64x512xf32, #tpu.memory_space<vmem>> -> memref<1x64x256xf32, #tpu.memory_space<vmem>>
    %48 = tpu.memref_squeeze %47 : memref<1x64x256xf32, #tpu.memory_space<vmem>> -> memref<64x256xf32, #tpu.memory_space<vmem>>
    %49 = tpu.memref_slice %arg6[%c0_i32_20] : memref<1x!tpu.dma_semaphore, #tpu.memory_space<semaphore_mem>> -> memref<1x!tpu.dma_semaphore, #tpu.memory_space<semaphore_mem>>
    %50 = tpu.memref_squeeze %49 : memref<1x!tpu.dma_semaphore, #tpu.memory_space<semaphore_mem>> -> memref<!tpu.dma_semaphore, #tpu.memory_space<semaphore_mem>>
    tpu.wait_dma2 semaphore(%50 : memref<!tpu.dma_semaphore, #tpu.memory_space<semaphore_mem>>) src(%46 : memref<64x256xf32, #tpu.memory_space<any>>) dst(%48 : memref<64x256xf32, #tpu.memory_space<vmem>>)
    %cst_25 = arith.constant 0.000000e+00 : f32
    %51 = vector.broadcast %cst_25 : f32 to vector<8x256xf32>
    %cst_26 = arith.constant 0.000000e+00 : f32
    %52 = vector.broadcast %cst_26 : f32 to vector<8x256xf32>
    %cst_27 = arith.constant 0.000000e+00 : f32
    %53 = vector.broadcast %cst_27 : f32 to vector<8x256xf32>
    %c0_28 = arith.constant 0 : index
    %c0_29 = arith.constant 0 : index
    %c111 = arith.constant 111 : index
    %54 = vector.load %arg5[%c0_28, %c0_29, %c111] : memref<1x64x512xf32, #tpu.memory_space<vmem>>, vector<1x64x256xf32>
    %55 = vector.shape_cast %54 : vector<1x64x256xf32> to vector<64x256xf32>
    %c0_30 = arith.constant 0 : index
    %c0_31 = arith.constant 0 : index
    %c0_32 = arith.constant 0 : index
    %56 = vector.load %arg2[%c0_30, %c0_31, %c0_32] : memref<9x8x64xf32, #tpu.memory_space<vmem>>, vector<1x8x64xf32>
    %57 = vector.shape_cast %56 : vector<1x8x64xf32> to vector<8x64xf32>
    %cst_33 = arith.constant dense<0.000000e+00> : vector<8x256xf32>
    %58 = tpu.matmul %57, %55, %cst_33 {dimension_numbers = #tpu.dot_dimension_numbers<[1], [0], [0], [1], [0, 0, 1, 1], [], []>} : vector<8x64xf32>, vector<64x256xf32>, vector<8x256xf32> -> vector<8x256xf32>
    %59 = arith.addf %51, %58 : vector<8x256xf32>
    %c0_34 = arith.constant 0 : index
    %c0_35 = arith.constant 0 : index
    %c112 = arith.constant 112 : index
    %60 = vector.load %arg5[%c0_34, %c0_35, %c112] : memref<1x64x512xf32, #tpu.memory_space<vmem>>, vector<1x64x256xf32>
    %61 = vector.shape_cast %60 : vector<1x64x256xf32> to vector<64x256xf32>
    %c1 = arith.constant 1 : index
    %c0_36 = arith.constant 0 : index
    %c0_37 = arith.constant 0 : index
    %62 = vector.load %arg2[%c1, %c0_36, %c0_37] : memref<9x8x64xf32, #tpu.memory_space<vmem>>, vector<1x8x64xf32>
    %63 = vector.shape_cast %62 : vector<1x8x64xf32> to vector<8x64xf32>
    %cst_38 = arith.constant dense<0.000000e+00> : vector<8x256xf32>
    %64 = tpu.matmul %63, %61, %cst_38 {dimension_numbers = #tpu.dot_dimension_numbers<[1], [0], [0], [1], [0, 0, 1, 1], [], []>} : vector<8x64xf32>, vector<64x256xf32>, vector<8x256xf32> -> vector<8x256xf32>
    %65 = arith.addf %52, %64 : vector<8x256xf32>
    %c0_39 = arith.constant 0 : index
    %c0_40 = arith.constant 0 : index
    %c113 = arith.constant 113 : index
    %66 = vector.load %arg5[%c0_39, %c0_40, %c113] : memref<1x64x512xf32, #tpu.memory_space<vmem>>, vector<1x64x256xf32>
    %67 = vector.shape_cast %66 : vector<1x64x256xf32> to vector<64x256xf32>
    %c2 = arith.constant 2 : index
    %c0_41 = arith.constant 0 : index
    %c0_42 = arith.constant 0 : index
    %68 = vector.load %arg2[%c2, %c0_41, %c0_42] : memref<9x8x64xf32, #tpu.memory_space<vmem>>, vector<1x8x64xf32>
    %69 = vector.shape_cast %68 : vector<1x8x64xf32> to vector<8x64xf32>
    %cst_43 = arith.constant dense<0.000000e+00> : vector<8x256xf32>
    %70 = tpu.matmul %69, %67, %cst_43 {dimension_numbers = #tpu.dot_dimension_numbers<[1], [0], [0], [1], [0, 0, 1, 1], [], []>} : vector<8x64xf32>, vector<64x256xf32>, vector<8x256xf32> -> vector<8x256xf32>
    %71 = arith.addf %53, %70 : vector<8x256xf32>
    %c0_44 = arith.constant 0 : index
    %c0_45 = arith.constant 0 : index
    %c127 = arith.constant 127 : index
    %72 = vector.load %arg5[%c0_44, %c0_45, %c127] : memref<1x64x512xf32, #tpu.memory_space<vmem>>, vector<1x64x256xf32>
    %73 = vector.shape_cast %72 : vector<1x64x256xf32> to vector<64x256xf32>
    %c3 = arith.constant 3 : index
    %c0_46 = arith.constant 0 : index
    %c0_47 = arith.constant 0 : index
    %74 = vector.load %arg2[%c3, %c0_46, %c0_47] : memref<9x8x64xf32, #tpu.memory_space<vmem>>, vector<1x8x64xf32>
    %75 = vector.shape_cast %74 : vector<1x8x64xf32> to vector<8x64xf32>
    %cst_48 = arith.constant dense<0.000000e+00> : vector<8x256xf32>
    %76 = tpu.matmul %75, %73, %cst_48 {dimension_numbers = #tpu.dot_dimension_numbers<[1], [0], [0], [1], [0, 0, 1, 1], [], []>} : vector<8x64xf32>, vector<64x256xf32>, vector<8x256xf32> -> vector<8x256xf32>
    %77 = arith.addf %59, %76 : vector<8x256xf32>
    %c0_49 = arith.constant 0 : index
    %c0_50 = arith.constant 0 : index
    %c128 = arith.constant 128 : index
    %78 = vector.load %arg5[%c0_49, %c0_50, %c128] : memref<1x64x512xf32, #tpu.memory_space<vmem>>, vector<1x64x256xf32>
    %79 = vector.shape_cast %78 : vector<1x64x256xf32> to vector<64x256xf32>
    %c4 = arith.constant 4 : index
    %c0_51 = arith.constant 0 : index
    %c0_52 = arith.constant 0 : index
    %80 = vector.load %arg2[%c4, %c0_51, %c0_52] : memref<9x8x64xf32, #tpu.memory_space<vmem>>, vector<1x8x64xf32>
    %81 = vector.shape_cast %80 : vector<1x8x64xf32> to vector<8x64xf32>
    %cst_53 = arith.constant dense<0.000000e+00> : vector<8x256xf32>
    %82 = tpu.matmul %81, %79, %cst_53 {dimension_numbers = #tpu.dot_dimension_numbers<[1], [0], [0], [1], [0, 0, 1, 1], [], []>} : vector<8x64xf32>, vector<64x256xf32>, vector<8x256xf32> -> vector<8x256xf32>
    %83 = arith.addf %65, %82 : vector<8x256xf32>
    %c0_54 = arith.constant 0 : index
    %c0_55 = arith.constant 0 : index
    %c129 = arith.constant 129 : index
    %84 = vector.load %arg5[%c0_54, %c0_55, %c129] : memref<1x64x512xf32, #tpu.memory_space<vmem>>, vector<1x64x256xf32>
    %85 = vector.shape_cast %84 : vector<1x64x256xf32> to vector<64x256xf32>
    %c5 = arith.constant 5 : index
    %c0_56 = arith.constant 0 : index
    %c0_57 = arith.constant 0 : index
    %86 = vector.load %arg2[%c5, %c0_56, %c0_57] : memref<9x8x64xf32, #tpu.memory_space<vmem>>, vector<1x8x64xf32>
    %87 = vector.shape_cast %86 : vector<1x8x64xf32> to vector<8x64xf32>
    %cst_58 = arith.constant dense<0.000000e+00> : vector<8x256xf32>
    %88 = tpu.matmul %87, %85, %cst_58 {dimension_numbers = #tpu.dot_dimension_numbers<[1], [0], [0], [1], [0, 0, 1, 1], [], []>} : vector<8x64xf32>, vector<64x256xf32>, vector<8x256xf32> -> vector<8x256xf32>
    %89 = arith.addf %71, %88 : vector<8x256xf32>
    %c0_59 = arith.constant 0 : index
    %c0_60 = arith.constant 0 : index
    %c143 = arith.constant 143 : index
    %90 = vector.load %arg5[%c0_59, %c0_60, %c143] : memref<1x64x512xf32, #tpu.memory_space<vmem>>, vector<1x64x256xf32>
    %91 = vector.shape_cast %90 : vector<1x64x256xf32> to vector<64x256xf32>
    %c6 = arith.constant 6 : index
    %c0_61 = arith.constant 0 : index
    %c0_62 = arith.constant 0 : index
    %92 = vector.load %arg2[%c6, %c0_61, %c0_62] : memref<9x8x64xf32, #tpu.memory_space<vmem>>, vector<1x8x64xf32>
    %93 = vector.shape_cast %92 : vector<1x8x64xf32> to vector<8x64xf32>
    %cst_63 = arith.constant dense<0.000000e+00> : vector<8x256xf32>
    %94 = tpu.matmul %93, %91, %cst_63 {dimension_numbers = #tpu.dot_dimension_numbers<[1], [0], [0], [1], [0, 0, 1, 1], [], []>} : vector<8x64xf32>, vector<64x256xf32>, vector<8x256xf32> -> vector<8x256xf32>
    %95 = arith.addf %77, %94 : vector<8x256xf32>
    %c0_64 = arith.constant 0 : index
    %c0_65 = arith.constant 0 : index
    %c144 = arith.constant 144 : index
    %96 = vector.load %arg5[%c0_64, %c0_65, %c144] : memref<1x64x512xf32, #tpu.memory_space<vmem>>, vector<1x64x256xf32>
    %97 = vector.shape_cast %96 : vector<1x64x256xf32> to vector<64x256xf32>
    %c7 = arith.constant 7 : index
    %c0_66 = arith.constant 0 : index
    %c0_67 = arith.constant 0 : index
    %98 = vector.load %arg2[%c7, %c0_66, %c0_67] : memref<9x8x64xf32, #tpu.memory_space<vmem>>, vector<1x8x64xf32>
    %99 = vector.shape_cast %98 : vector<1x8x64xf32> to vector<8x64xf32>
    %cst_68 = arith.constant dense<0.000000e+00> : vector<8x256xf32>
    %100 = tpu.matmul %99, %97, %cst_68 {dimension_numbers = #tpu.dot_dimension_numbers<[1], [0], [0], [1], [0, 0, 1, 1], [], []>} : vector<8x64xf32>, vector<64x256xf32>, vector<8x256xf32> -> vector<8x256xf32>
    %101 = arith.addf %83, %100 : vector<8x256xf32>
    %c0_69 = arith.constant 0 : index
    %c0_70 = arith.constant 0 : index
    %c145 = arith.constant 145 : index
    %102 = vector.load %arg5[%c0_69, %c0_70, %c145] : memref<1x64x512xf32, #tpu.memory_space<vmem>>, vector<1x64x256xf32>
    %103 = vector.shape_cast %102 : vector<1x64x256xf32> to vector<64x256xf32>
    %c8 = arith.constant 8 : index
    %c0_71 = arith.constant 0 : index
    %c0_72 = arith.constant 0 : index
    %104 = vector.load %arg2[%c8, %c0_71, %c0_72] : memref<9x8x64xf32, #tpu.memory_space<vmem>>, vector<1x8x64xf32>
    %105 = vector.shape_cast %104 : vector<1x8x64xf32> to vector<8x64xf32>
    %cst_73 = arith.constant dense<0.000000e+00> : vector<8x256xf32>
    %106 = tpu.matmul %105, %103, %cst_73 {dimension_numbers = #tpu.dot_dimension_numbers<[1], [0], [0], [1], [0, 0, 1, 1], [], []>} : vector<8x64xf32>, vector<64x256xf32>, vector<8x256xf32> -> vector<8x256xf32>
    %107 = arith.addf %89, %106 : vector<8x256xf32>
    %108 = arith.addf %43, %101 : vector<8x256xf32>
    %109 = arith.mulf %95, %36 : vector<8x256xf32>
    %110 = arith.addf %108, %109 : vector<8x256xf32>
    %111 = arith.mulf %107, %40 : vector<8x256xf32>
    %112 = arith.addf %110, %111 : vector<8x256xf32>
    %113 = vector.extract_strided_slice %112 {offsets = [0, 0], sizes = [3, 256], strides = [1, 1]} : vector<8x256xf32> to vector<3x256xf32>
    %c0_74 = arith.constant 0 : index
    %c0_75 = arith.constant 0 : index
    %c0_76 = arith.constant 0 : index
    %114 = vector.load %arg4[%c0_74, %c0_75, %c0_76] : memref<1x3x256xf32, #tpu.memory_space<vmem>>, vector<1x3x256xf32>
    %115 = vector.shape_cast %114 : vector<1x3x256xf32> to vector<3x256xf32>
    %116 = vector.shape_cast %113 : vector<3x256xf32> to vector<1x3x256xf32>
    tpu.vector_store %arg4[%c0_74, %c0_75, %c0_76], %116 {strides = array<i32>} : memref<1x3x256xf32, #tpu.memory_space<vmem>>, vector<1x3x256xf32>,
    return
  }
  func.func @transform_1(%arg0: i32) -> (i32, i32, i32) {
    %c0_i32 = arith.constant 0 : i32
    %c0_i32_0 = arith.constant 0 : i32
    %c0_i32_1 = arith.constant 0 : i32
    %c0_i32_2 = arith.constant 0 : i32
    return %c0_i32, %c0_i32_0, %c0_i32_1 : i32, i32, i32
  }
  func.func @transform_2(%arg0: i32) -> (i32, i32) {
    %c0_i32 = arith.constant 0 : i32
    %c0_i32_0 = arith.constant 0 : i32
    %c0_i32_1 = arith.constant 0 : i32
    return %c0_i32, %c0_i32_0 : i32, i32
  }
  func.func @transform_3(%arg0: i32) -> (i32, i32, i32) {
    %c0_i32 = arith.constant 0 : i32
    %c0_i32_0 = arith.constant 0 : i32
    %c0_i32_1 = arith.constant 0 : i32
    return %arg0, %c0_i32, %c0_i32_0 : i32, i32, i32
  }
}

</mosaic_0001>

<llo_original>
// kernel: tpu_custom_call.1
$region0: #{tpu_custom_call.1}
  #allocation0 [shape = 'u32[]', space=smem, size = 0x4, offset = 0x4, fixed_abs, tag = 'smem constant byte address 0x4 - core index']
  #allocation1 [shape = 'u32[144,128]{1,0:T(1,128)}', space=vmem, size = 0x12000, scoped, tag = 'internal scratch']
  #allocation2 [shape = 'f32[1,64,512]{2,1,0:T(8,128)}', space=vmem, size = 0x20000, scoped, tag = 'scratch operand']
  #allocation3 [shape = 's32[1]{0}', space=sflag, size = 0x4, scoped, tag = 'scratch operand']
  #allocation6 [shape = 's32[]', space=sflag, size = 0x4, offset = 0, fixed_abs, tag = 'sflag constant byte address 0x0 - dummy sync flag']
  %s0 = inlined_call_operand.hbm [shape: f32[2,64,256], index: 0, kind: input, shape index: {}]
  %s1 = inlined_call_operand.hbm [shape: f32[9,8,64], index: 1, kind: input, shape index: {}]
  %s2 = inlined_call_operand.vmem [shape: f32[8,1], index: 2, kind: input, shape index: {}]
  %s3 = inlined_call_operand.vmem [shape: f32[2,3,256], index: 3, kind: output, shape index: {}]
  %s4 = sld [smem:[#allocation0]]
  $region45: #{tpu_custom_call.1} parent=0
    _
  %s6 = ssub.s32 1, %s4
  %s7 = scalar_select 0, %s6, %s4
  $region1: #{tpu_custom_call.1} parent=0
    #allocation4 [shape = 'u8[36864]{0}', space=vmem, size = 0x9000, scoped, tag = 'input window, operand 1, single buffered']
    #allocation5 [shape = 's32[2]{0}', space=sflag, size = 0x8, scoped, tag = 'scoped memory for tpu_custom_call.1']
    %8 = vsyncpa [#allocation5], 0
    loop: start=0, step=1, limit=4
    $region2: #{tpu_custom_call.1} parent=1 // loop_pre_header
      _
    $region3: #{tpu_custom_call.1} parent=1 // loop_header
      %s10 = sphi 0, %s14
      %p11 = scmp.ge.s32.totalorder %s10, 4
      %s18 = sphi 0, %s18
      %s20 = sphi 0, %s18
      %s21 = sphi 0, %s20
      %s35 = sphi 0, %s21
      %s39 = sphi 0, %s39
      %s41 = sphi 0, %s39
      %s42 = sphi 0, %s41
      %s56 = sphi 0, %s42
      %s62 = sphi 0, %s64
      %s65 = sphi 0, %s62
      %s66 = sphi 0, %s65
      %s82 = sphi 0, %s66
    $region4: #{tpu_custom_call.1} parent=1 // loop_header_branch
      %13 = sbr.rel (%p11) target = $region8
    $region5: #{tpu_custom_call.1} parent=1 // loop_body
      %s15 = ssub.s32 %s10, 1
      %s16 = ssub.s32 %s10, 2
      %s17 = sadd.s32 %s10, 1
      %s19 = sadd.s32 %s18, 1
      %p22 = scmp.eq.s32.totalorder %s10, 1
      %p23 = scmp.ne.s32.totalorder %s18, %s20
      %p24 = scmp.eq.s32.totalorder %s10, 0
      %p25 = por %p23, %p24
      %p26 = scmp.ne.s32.totalorder %s18, %s20
      %p27 = scmp.eq.s32.totalorder %s15, 1
      %p28 = por %p26, %p27
      %p29 = scmp.ne.s32.totalorder %s20, %s21
      %p30 = scmp.eq.s32.totalorder %s15, 0
      %p31 = por %p29, %p30
      %p32 = scmp.ne.s32.totalorder %s20, %s21
      %p33 = scmp.eq.s32.totalorder %s16, 1
      %p34 = por %p32, %p33
      %p36 = scmp.ne.s32.totalorder %s21, %s35
      %p37 = scmp.eq.s32.totalorder %s16, 0
      %p38 = por %p36, %p37
      %s40 = sadd.s32 %s39, 1
      %p43 = scmp.eq.s32.totalorder %s10, 1
      %p44 = scmp.ne.s32.totalorder %s39, %s41
      %p45 = scmp.eq.s32.totalorder %s10, 0
      %p46 = por %p44, %p45
      %p47 = scmp.ne.s32.totalorder %s39, %s41
      %p48 = scmp.eq.s32.totalorder %s15, 1
      %p49 = por %p47, %p48
      %p50 = scmp.ne.s32.totalorder %s41, %s42
      %p51 = scmp.eq.s32.totalorder %s15, 0
      %p52 = por %p50, %p51
      %p53 = scmp.ne.s32.totalorder %s41, %s42
      %p54 = scmp.eq.s32.totalorder %s16, 1
      %p55 = por %p53, %p54
      %p57 = scmp.ne.s32.totalorder %s42, %s56
      %p58 = scmp.eq.s32.totalorder %s16, 0
      %p59 = por %p57, %p58
      %s60 = ssub.s32 %s10, %s17
      %p61 = scmp.eq.s32.totalorder %s60, 0
      %s63 = sadd.s32 %s62, 1
      %s64 = scalar_select %p61, %s62, %s63
      %p67 = pneg %p61
      %p68 = scmp.eq.s32.totalorder %s10, 1
      %p69 = por %p67, %p68
      %p70 = scmp.ne.s32.totalorder %s62, %s65
      %p71 = scmp.eq.s32.totalorder %s10, 0
      %p72 = por %p70, %p71
      %p73 = scmp.ne.s32.totalorder %s62, %s65
      %p74 = scmp.eq.s32.totalorder %s15, 1
      %p75 = por %p73, %p74
      %p76 = scmp.ne.s32.totalorder %s65, %s66
      %p77 = scmp.eq.s32.totalorder %s15, 0
      %p78 = por %p76, %p77
      %p79 = scmp.ne.s32.totalorder %s65, %s66
      %p80 = scmp.eq.s32.totalorder %s16, 1
      %p81 = por %p79, %p80
      %p83 = scmp.ne.s32.totalorder %s66, %s82
      %p84 = scmp.eq.s32.totalorder %s16, 0
      %p85 = por %p83, %p84
      %p86 = scmp.le.s32.totalorder 1, %s10
      %p87 = scmp.lt.s32.totalorder %s10, 3
      %p88 = pnand %p86, %p87
      %p89 = pneg %p88
      // Predicated region
      $region9: #{tpu_custom_call.1} parent=5 // pred_check
        _
      $region10: #{tpu_custom_call.1} parent=5 // pred_check_branch
        %91 = sbr.rel (%p88) target = $region12
      $region11: #{tpu_custom_call.1} parent=5 // pred_region
        %s92 = ssub.s32 %s10, 1
        // Predicated region
        $region13: #{tpu_custom_call.1} parent=11 // pred_check
          %p93 = pneg %p31
        $region14: #{tpu_custom_call.1} parent=11 // pred_check_branch
          %95 = sbr.rel (%p93) target = $region16
        $region15: #{tpu_custom_call.1} parent=11 // pred_region
          %s97 = ssub.s32 1152, 1152
          %98 = vsyncadd [#allocation5], %s97
          %s99 = sshll.u32 [#allocation4], 4
          %s100 = int_to_ptr.vmem [resolvable:$true] %s99
          %105 = dma.hbm_to_vmem [thread:$0]  %s1, 1152, %s100, [#allocation5], 128, 128, 8
        $region16: #{tpu_custom_call.1} parent=11 // pred_fallthru
          _
        // Predicated region
        $region17: #{tpu_custom_call.1} parent=11 // pred_check
          %p106 = pneg %p52
        $region18: #{tpu_custom_call.1} parent=11 // pred_check_branch
          %108 = sbr.rel (%p106) target = $region20
        $region19: #{tpu_custom_call.1} parent=11 // pred_region
          _
        $region20: #{tpu_custom_call.1} parent=11 // pred_fallthru
          _
      $region12: #{tpu_custom_call.1} parent=5 // pred_fallthru
        _
      %p109 = scmp.lt.s32.totalorder %s10, 2
      // Predicated region
      $region21: #{tpu_custom_call.1} parent=5 // pred_check
        %p110 = pneg %p109
      $region22: #{tpu_custom_call.1} parent=5 // pred_check_branch
        %112 = sbr.rel (%p110) target = $region24
      $region23: #{tpu_custom_call.1} parent=5 // pred_region
        _
      $region24: #{tpu_custom_call.1} parent=5 // pred_fallthru
        _
      %p113 = scmp.le.s32.totalorder 1, %s10
      %p114 = scmp.lt.s32.totalorder %s10, 3
      %p115 = pnand %p113, %p114
      %p116 = pneg %p115
      // Predicated region
      $region25: #{tpu_custom_call.1} parent=5 // pred_check
        _
      $region26: #{tpu_custom_call.1} parent=5 // pred_check_branch
        %118 = sbr.rel (%p115) target = $region28
      $region27: #{tpu_custom_call.1} parent=5 // pred_region
        %s119 = ssub.s32 %s10, 1
        // Predicated region
        $region29: #{tpu_custom_call.1} parent=27 // pred_check
          %p120 = pneg %p31
        $region30: #{tpu_custom_call.1} parent=27 // pred_check_branch
          %122 = sbr.rel (%p120) target = $region32
        $region31: #{tpu_custom_call.1} parent=27 // pred_region
          %123 = dma.done [#allocation5], 1152
        $region32: #{tpu_custom_call.1} parent=27 // pred_fallthru
          _
        %p124 = pneg %p31
        %p125 = pneg %p28
        %p126 = pneg %p52
        %p127 = pneg %p49
        %p128 = pneg %p78
        %p129 = pneg %p75
        %p130 = scmp.lt.s32.totalorder %s15, 1
        %s131 = scalar_select %p130, %s15, 1
        %s132 = smul.addr %s131, 2
        %s133 = smul.addr %s132, 4
        %s134 = scalar_lea.vmem %s3, %s133
        %p135 = scmp.lt.s32.totalorder %s15, 1
        %s136 = scalar_select %p135, %s15, 1
        %s137 = smul.addr %s136, 2
        %s138 = smul.addr %s137, 4
        %s139 = scalar_lea.vmem %s3, %s138
        %s140 = smul.u32 %s15, 16
        %s141 = smul.addr %s140, 128
        %s142 = scalar_lea.hbm %s0, %s141
        %s143 = scalar_lea.vmem [#allocation2], 8
        %s145 = sshll.u32 %s143, 4
        %s146 = int_to_ptr.vmem [resolvable:$true] %s145
        %148 = dma.hbm_to_vmem [thread:$0]  %s142, 2048, %s146, [#allocation3], 256, 512, 16
        %149 = vst [vmem:[#allocation2] sm:$0xff] 0.0
        %150 = vst [vmem:[#allocation2 + $0x20] sm:$0xff] 0.0
        %151 = vst [vmem:[#allocation2 + $0x40] sm:$0xff] 0.0
        %152 = vst [vmem:[#allocation2 + $0x60] sm:$0xff] 0.0
        %153 = vst [vmem:[#allocation2 + $0x80] sm:$0xff] 0.0
        %154 = vst [vmem:[#allocation2 + $0xa0] sm:$0xff] 0.0
        %155 = vst [vmem:[#allocation2 + $0xc0] sm:$0xff] 0.0
        %156 = vst [vmem:[#allocation2 + $0xe0] sm:$0xff] 0.0
        %157 = vst [vmem:[#allocation2 + $0x18] sm:$0xff] 0.0
        %158 = vst [vmem:[#allocation2 + $0x38] sm:$0xff] 0.0
        %159 = vst [vmem:[#allocation2 + $0x58] sm:$0xff] 0.0
        %160 = vst [vmem:[#allocation2 + $0x78] sm:$0xff] 0.0
        %161 = vst [vmem:[#allocation2 + $0x98] sm:$0xff] 0.0
        %162 = vst [vmem:[#allocation2 + $0xb8] sm:$0xff] 0.0
        %163 = vst [vmem:[#allocation2 + $0xd8] sm:$0xff] 0.0
        %164 = vst [vmem:[#allocation2 + $0xf8] sm:$0xff] 0.0
        %v165 = vlaneseq
        %v166 = vand.u32 %v165, 127
        %v167 = vadd.s32 %v166, 128
        %vm168 = vcmp.lt.s32.totalorder %v166, 0
        %v169 = vsub.s32 0, %v166
        %v170 = vsel %vm168, %v169, %v166
        %v171 = vshrl.u32 %v170, 4
        %v172 = vand.u32 %v170, 15
        %v173 = vsub.s32 0, %v172
        %v174 = vsel %vm168, %v173, %v172
        %vm175 = vcmp.lt.s32.totalorder %v167, 0
        %v176 = vsub.s32 0, %v167
        %v177 = vsel %vm175, %v176, %v167
        %v178 = vshrl.u32 %v177, 4
        %v179 = vand.u32 %v177, 15
        %v180 = vsub.s32 0, %v179
        %v181 = vsel %vm175, %v180, %v179
        %vm182 = vcmp.ne.s32.totalorder %v174, 0
        %vm183 = vcmp.ne.s32.totalorder %v181, 0
        %vm184 = vcmp.lt.s32.totalorder %v174, 0
        %vm185 = vcmp.lt.s32.totalorder %v181, 0
        %vm186 = vmand %vm184, %vm182
        %vm187 = vmand %vm185, %vm183
        %v188 = vadd.s32 %v174, 16
        %v189 = vadd.s32 %v181, 16
        %v190 = vsel %vm186, %v188, %v174
        %v191 = vsel %vm187, %v189, %v181
        %vm192 = vcmp.ge.s32.totalorder %v190, 1
        %vm193 = vcmp.ge.s32.totalorder %v191, 1
        %v194 = vsel %vm192, 1, 0
        %v195 = vsel %vm193, 1, 0
        %v196 = vcvt.s32.f32 %v194
        %v197 = vcvt.s32.f32 %v195
        %vm198 = vcmp.le.s32.totalorder %v190, 14
        %vm199 = vcmp.le.s32.totalorder %v191, 14
        %v200 = vsel %vm198, 1, 0
        %v201 = vsel %vm199, 1, 0
        %v202 = vcvt.s32.f32 %v200
        %v203 = vcvt.s32.f32 %v201
        %v204 = vld [vmem:[%s2] sm:$0xff]
        %206 = vset.pattern.permute.xlu0 0
        %207 = vperm.xlu0 %206, %v204
        %v208 = vpop.permute.xlu0 %207
        %s210 = smul.u32 8, 8
        %s211 = smul.u32 %s210, 2
        %s212 = sshll.u32 %s211, 4
        %213 = dma.done [#allocation3], %s212
        %v214 = vld [vmem:[#allocation2] sm:$0xff]
        %v215 = vld [vmem:[#allocation2 + $0x8] sm:$0xff]
        %v216 = vld [vmem:[#allocation2 + $0x10] sm:$0xff]
        %v217 = vld [vmem:[#allocation2 + $0x20] sm:$0xff]
        %v218 = vld [vmem:[#allocation2 + $0x28] sm:$0xff]
        %v219 = vld [vmem:[#allocation2 + $0x30] sm:$0xff]
        %v220 = vld [vmem:[#allocation2 + $0x40] sm:$0xff]
        %v221 = vld [vmem:[#allocation2 + $0x48] sm:$0xff]
        %v222 = vld [vmem:[#allocation2 + $0x50] sm:$0xff]
        %v223 = vld [vmem:[#allocation2 + $0x60] sm:$0xff]
        %v224 = vld [vmem:[#allocation2 + $0x68] sm:$0xff]
        %v225 = vld [vmem:[#allocation2 + $0x70] sm:$0xff]
        %v226 = vld [vmem:[#allocation2 + $0x80] sm:$0xff]
        %v227 = vld [vmem:[#allocation2 + $0x88] sm:$0xff]
        %v228 = vld [vmem:[#allocation2 + $0x90] sm:$0xff]
        %v229 = vld [vmem:[#allocation2 + $0xa0] sm:$0xff]
        %v230 = vld [vmem:[#allocation2 + $0xa8] sm:$0xff]
        %v231 = vld [vmem:[#allocation2 + $0xb0] sm:$0xff]
        %v232 = vld [vmem:[#allocation2 + $0xc0] sm:$0xff]
        %v233 = vld [vmem:[#allocation2 + $0xc8] sm:$0xff]
        %v234 = vld [vmem:[#allocation2 + $0xd0] sm:$0xff]
        %v235 = vld [vmem:[#allocation2 + $0xe0] sm:$0xff]
        %v236 = vld [vmem:[#allocation2 + $0xe8] sm:$0xff]
        %v237 = vld [vmem:[#allocation2 + $0xf0] sm:$0xff]
        %v238 = vld [vmem:[#allocation4] sm:$0xff]
        %s239 = scalar_lea.vmem [#allocation4], 8
        %v240 = vld [vmem:[%s239] sm:$0xff]
        %s241 = scalar_lea.vmem [#allocation4], 16
        %v242 = vld [vmem:[%s241] sm:$0xff]
        %s243 = scalar_lea.vmem [#allocation4], 24
        %v244 = vld [vmem:[%s243] sm:$0xff]
        %269 = vrot.lane.b32.xlu0 %v214, 1
        %v270 = vpop.permute.xlu0 %269
        %271 = vrot.lane.b32.xlu0 %v215, 1
        %v272 = vpop.permute.xlu0 %271
        %273 = vrot.lane.b32.xlu0 %v216, 1
        %v274 = vpop.permute.xlu0 %273
        %275 = vrot.lane.b32.xlu0 %v217, 1
        %v276 = vpop.permute.xlu0 %275
        %277 = vrot.lane.b32.xlu0 %v218, 1
        %v278 = vpop.permute.xlu0 %277
        %279 = vrot.lane.b32.xlu0 %v219, 1
        %v280 = vpop.permute.xlu0 %279
        %281 = vrot.lane.b32.xlu0 %v220, 1
        %v282 = vpop.permute.xlu0 %281
        %283 = vrot.lane.b32.xlu0 %v221, 1
        %v284 = vpop.permute.xlu0 %283
        %285 = vrot.lane.b32.xlu0 %v222, 1
        %v286 = vpop.permute.xlu0 %285
        %287 = vrot.lane.b32.xlu0 %v223, 1
        %v288 = vpop.permute.xlu0 %287
        %289 = vrot.lane.b32.xlu0 %v224, 1
        %v290 = vpop.permute.xlu0 %289
        %291 = vrot.lane.b32.xlu0 %v225, 1
        %v292 = vpop.permute.xlu0 %291
        %293 = vrot.lane.b32.xlu0 %v226, 1
        %v294 = vpop.permute.xlu0 %293
        %295 = vrot.lane.b32.xlu0 %v227, 1
        %v296 = vpop.permute.xlu0 %295
        %297 = vrot.lane.b32.xlu0 %v228, 1
        %v298 = vpop.permute.xlu0 %297
        %299 = vrot.lane.b32.xlu0 %v229, 1
        %v300 = vpop.permute.xlu0 %299
        %301 = vrot.lane.b32.xlu0 %v230, 1
        %v302 = vpop.permute.xlu0 %301
        %303 = vrot.lane.b32.xlu0 %v231, 1
        %v304 = vpop.permute.xlu0 %303
        %305 = vrot.lane.b32.xlu0 %v232, 1
        %v306 = vpop.permute.xlu0 %305
        %307 = vrot.lane.b32.xlu0 %v233, 1
        %v308 = vpop.permute.xlu0 %307
        %309 = vrot.lane.b32.xlu0 %v234, 1
        %v310 = vpop.permute.xlu0 %309
        %311 = vrot.lane.b32.xlu0 %v235, 1
        %v312 = vpop.permute.xlu0 %311
        %313 = vrot.lane.b32.xlu0 %v236, 1
        %v314 = vpop.permute.xlu0 %313
        %315 = vrot.lane.b32.xlu0 %v237, 1
        %v316 = vpop.permute.xlu0 %315
        %vm317 = vcmask 7168
        %v318 = vsel %vm317, %v270, %v272
        %v319 = vsel %vm317, %v272, %v274
        %v320 = vsel %vm317, %v276, %v278
        %v321 = vsel %vm317, %v278, %v280
        %v322 = vsel %vm317, %v282, %v284
        %v323 = vsel %vm317, %v284, %v286
        %v324 = vsel %vm317, %v288, %v290
        %v325 = vsel %vm317, %v290, %v292
        %v326 = vsel %vm317, %v294, %v296
        %v327 = vsel %vm317, %v296, %v298
        %v328 = vsel %vm317, %v300, %v302
        %v329 = vsel %vm317, %v302, %v304
        %v330 = vsel %vm317, %v306, %v308
        %v331 = vsel %vm317, %v308, %v310
        %v332 = vsel %vm317, %v312, %v314
        %v333 = vsel %vm317, %v314, %v316
        %vm350 = vcmask 523264
        %v352 = vsel %vm350, %v244, 0
        %354 = vmatprep.subr.mxu0 %v319
        %355 = vmatpush1.msra.mxu0 %v318
        %356 = vmatprep.subr.mxu0 %v321
        %357 = vmatpush1.msra.mxu0 %v320
        %358 = vmatprep.subr.mxu0 %v323
        %359 = vmatpush1.msra.mxu0 %v322
        %360 = vmatprep.subr.mxu0 %v325
        %361 = vmatpush1.msra.mxu0 %v324
        %362 = vmatprep.subr.mxu0 %v327
        %363 = vmatpush1.msra.mxu0 %v326
        %364 = vmatprep.subr.mxu0 %v329
        %365 = vmatpush1.msra.mxu0 %v328
        %366 = vmatprep.subr.mxu0 %v331
        %367 = vmatpush1.msra.mxu0 %v330
        %368 = vmatprep.subr.mxu0 %v333
        %369 = vmatpush1.msra.mxu0 %v332
        %370 = vmatprep.subr.mxu0 0.0
        %371 = vmatpush1.msra.mxu0 0.0
        %372 = vmatprep.subr.mxu0 0.0
        %373 = vmatpush1.msra.mxu0 0.0
        %374 = vmatprep.subr.mxu0 0.0
        %375 = vmatpush1.msra.mxu0 0.0
        %376 = vmatprep.subr.mxu0 0.0
        %377 = vmatpush1.msra.mxu0 0.0
        %378 = vmatprep.subr.mxu0 0.0
        %379 = vmatpush1.msra.mxu0 0.0
        %380 = vmatprep.subr.mxu0 0.0
        %381 = vmatpush1.msra.mxu0 0.0
        %382 = vmatprep.subr.mxu0 0.0
        %383 = vmatpush1.msra.mxu0 0.0
        %384 = vmatprep.subr.mxu0 0.0
        %385 = vmatpush1.msra.mxu0 0.0
        %386 = vmatprep.subr.mxu0 0.0
        %387 = vmatpush1.msra.mxu0 0.0
        %388 = vmatprep.subr.mxu0 0.0
        %389 = vmatpush1.msra.mxu0 0.0
        %390 = vmatprep.subr.mxu0 0.0
        %391 = vmatpush1.msra.mxu0 0.0
        %392 = vmatprep.subr.mxu0 0.0
        %393 = vmatpush1.msra.mxu0 0.0
        %394 = vmatprep.subr.mxu0 0.0
        %395 = vmatpush1.msra.mxu0 0.0
        %396 = vmatprep.subr.mxu0 0.0
        %397 = vmatpush1.msra.mxu0 0.0
        %398 = vmatprep.subr.mxu0 0.0
        %399 = vmatpush1.msra.mxu0 0.0
        %400 = vmatprep.subr.mxu0 0.0
        %401 = vmatpush1.msra.mxu0 0.0
        %402 = vmatprep.subr.mxu0 0.0
        %403 = vmatpush1.msra.mxu0 0.0
        %404 = vmatprep.subr.mxu0 0.0
        %405 = vmatpush1.msra.mxu0 0.0
        %406 = vmatprep.subr.mxu0 0.0
        %407 = vmatpush1.msra.mxu0 0.0
        %408 = vmatprep.subr.mxu0 0.0
        %409 = vmatpush1.msra.mxu0 0.0
        %410 = vmatprep.subr.mxu0 0.0
        %411 = vmatpush1.msra.mxu0 0.0
        %412 = vmatprep.subr.mxu0 0.0
        %413 = vmatpush1.msra.mxu0 0.0
        %414 = vmatprep.subr.mxu0 0.0
        %415 = vmatpush1.msra.mxu0 0.0
        %416 = vmatprep.subr.mxu0 0.0
        %417 = vmatpush1.msra.mxu0 0.0
        %418 = vmatprep.mubr.f32.mxu0 0.0
        %419 = vmatmul.mubr.f32.gmra.mrb[0].mxu0 %v352
        %v420 = vpop.f32.mrb[0].mxu0
        %v421 = vadd.f32 0.0, %v420
        %v422 = vpop.f32.mrb[0].mxu0
        %v423 = vadd.f32 0.0, %v422
        %424 = vdwg.mxu0
        %425 = vrot.lane.b32.xlu0 %v214, 17
        %v426 = vpop.permute.xlu0 %425
        %427 = vrot.lane.b32.xlu0 %v215, 17
        %v428 = vpop.permute.xlu0 %427
        %429 = vrot.lane.b32.xlu0 %v216, 17
        %v430 = vpop.permute.xlu0 %429
        %431 = vrot.lane.b32.xlu0 %v217, 17
        %v432 = vpop.permute.xlu0 %431
        %433 = vrot.lane.b32.xlu0 %v218, 17
        %v434 = vpop.permute.xlu0 %433
        %435 = vrot.lane.b32.xlu0 %v219, 17
        %v436 = vpop.permute.xlu0 %435
        %437 = vrot.lane.b32.xlu0 %v220, 17
        %v438 = vpop.permute.xlu0 %437
        %439 = vrot.lane.b32.xlu0 %v221, 17
        %v440 = vpop.permute.xlu0 %439
        %441 = vrot.lane.b32.xlu0 %v222, 17
        %v442 = vpop.permute.xlu0 %441
        %443 = vrot.lane.b32.xlu0 %v223, 17
        %v444 = vpop.permute.xlu0 %443
        %445 = vrot.lane.b32.xlu0 %v224, 17
        %v446 = vpop.permute.xlu0 %445
        %447 = vrot.lane.b32.xlu0 %v225, 17
        %v448 = vpop.permute.xlu0 %447
        %449 = vrot.lane.b32.xlu0 %v226, 17
        %v450 = vpop.permute.xlu0 %449
        %451 = vrot.lane.b32.xlu0 %v227, 17
        %v452 = vpop.permute.xlu0 %451
        %453 = vrot.lane.b32.xlu0 %v228, 17
        %v454 = vpop.permute.xlu0 %453
        %455 = vrot.lane.b32.xlu0 %v229, 17
        %v456 = vpop.permute.xlu0 %455
        %457 = vrot.lane.b32.xlu0 %v230, 17
        %v458 = vpop.permute.xlu0 %457
        %459 = vrot.lane.b32.xlu0 %v231, 17
        %v460 = vpop.permute.xlu0 %459
        %461 = vrot.lane.b32.xlu0 %v232, 17
        %v462 = vpop.permute.xlu0 %461
        %463 = vrot.lane.b32.xlu0 %v233, 17
        %v464 = vpop.permute.xlu0 %463
        %465 = vrot.lane.b32.xlu0 %v234, 17
        %v466 = vpop.permute.xlu0 %465
        %467 = vrot.lane.b32.xlu0 %v235, 17
        %v468 = vpop.permute.xlu0 %467
        %469 = vrot.lane.b32.xlu0 %v236, 17
        %v470 = vpop.permute.xlu0 %469
        %471 = vrot.lane.b32.xlu0 %v237, 17
        %v472 = vpop.permute.xlu0 %471
        %vm473 = vcmask 138240
        %v474 = vsel %vm473, %v426, %v428
        %v475 = vsel %vm473, %v428, %v430
        %v476 = vsel %vm473, %v432, %v434
        %v477 = vsel %vm473, %v434, %v436
        %v478 = vsel %vm473, %v438, %v440
        %v479 = vsel %vm473, %v440, %v442
        %v480 = vsel %vm473, %v444, %v446
        %v481 = vsel %vm473, %v446, %v448
        %v482 = vsel %vm473, %v450, %v452
        %v483 = vsel %vm473, %v452, %v454
        %v484 = vsel %vm473, %v456, %v458
        %v485 = vsel %vm473, %v458, %v460
        %v486 = vsel %vm473, %v462, %v464
        %v487 = vsel %vm473, %v464, %v466
        %v488 = vsel %vm473, %v468, %v470
        %v489 = vsel %vm473, %v470, %v472
        %v507 = vsel %vm350, %v238, 0
        %509 = vmatprep.subr.mxu0 %v475
        %510 = vmatpush1.msra.mxu0 %v474
        %511 = vmatprep.subr.mxu0 %v477
        %512 = vmatpush1.msra.mxu0 %v476
        %513 = vmatprep.subr.mxu0 %v479
        %514 = vmatpush1.msra.mxu0 %v478
        %515 = vmatprep.subr.mxu0 %v481
        %516 = vmatpush1.msra.mxu0 %v480
        %517 = vmatprep.subr.mxu0 %v483
        %518 = vmatpush1.msra.mxu0 %v482
        %519 = vmatprep.subr.mxu0 %v485
        %520 = vmatpush1.msra.mxu0 %v484
        %521 = vmatprep.subr.mxu0 %v487
        %522 = vmatpush1.msra.mxu0 %v486
        %523 = vmatprep.subr.mxu0 %v489
        %524 = vmatpush1.msra.mxu0 %v488
        %525 = vmatprep.subr.mxu0 0.0
        %526 = vmatpush1.msra.mxu0 0.0
        %527 = vmatprep.subr.mxu0 0.0
        %528 = vmatpush1.msra.mxu0 0.0
        %529 = vmatprep.subr.mxu0 0.0
        %530 = vmatpush1.msra.mxu0 0.0
        %531 = vmatprep.subr.mxu0 0.0
        %532 = vmatpush1.msra.mxu0 0.0
        %533 = vmatprep.subr.mxu0 0.0
        %534 = vmatpush1.msra.mxu0 0.0
        %535 = vmatprep.subr.mxu0 0.0
        %536 = vmatpush1.msra.mxu0 0.0
        %537 = vmatprep.subr.mxu0 0.0
        %538 = vmatpush1.msra.mxu0 0.0
        %539 = vmatprep.subr.mxu0 0.0
        %540 = vmatpush1.msra.mxu0 0.0
        %541 = vmatprep.subr.mxu0 0.0
        %542 = vmatpush1.msra.mxu0 0.0
        %543 = vmatprep.subr.mxu0 0.0
        %544 = vmatpush1.msra.mxu0 0.0
        %545 = vmatprep.subr.mxu0 0.0
        %546 = vmatpush1.msra.mxu0 0.0
        %547 = vmatprep.subr.mxu0 0.0
        %548 = vmatpush1.msra.mxu0 0.0
        %549 = vmatprep.subr.mxu0 0.0
        %550 = vmatpush1.msra.mxu0 0.0
        %551 = vmatprep.subr.mxu0 0.0
        %552 = vmatpush1.msra.mxu0 0.0
        %553 = vmatprep.subr.mxu0 0.0
        %554 = vmatpush1.msra.mxu0 0.0
        %555 = vmatprep.subr.mxu0 0.0
        %556 = vmatpush1.msra.mxu0 0.0
        %557 = vmatprep.subr.mxu0 0.0
        %558 = vmatpush1.msra.mxu0 0.0
        %559 = vmatprep.subr.mxu0 0.0
        %560 = vmatpush1.msra.mxu0 0.0
        %561 = vmatprep.subr.mxu0 0.0
        %562 = vmatpush1.msra.mxu0 0.0
        %563 = vmatprep.subr.mxu0 0.0
        %564 = vmatpush1.msra.mxu0 0.0
        %565 = vmatprep.subr.mxu0 0.0
        %566 = vmatpush1.msra.mxu0 0.0
        %567 = vmatprep.subr.mxu0 0.0
        %568 = vmatpush1.msra.mxu0 0.0
        %569 = vmatprep.subr.mxu0 0.0
        %570 = vmatpush1.msra.mxu0 0.0
        %571 = vmatprep.subr.mxu0 0.0
        %572 = vmatpush1.msra.mxu0 0.0
        %573 = vmatprep.mubr.f32.mxu0 0.0
        %574 = vmatmul.mubr.f32.gmra.mrb[0].mxu0 %v507
        %v575 = vpop.f32.mrb[0].mxu0
        %v576 = vadd.f32 %v421, %v575
        %v577 = vpop.f32.mrb[0].mxu0
        %v578 = vadd.f32 %v423, %v577
        %579 = vdwg.mxu0
        %s580 = scalar_lea.vmem [#allocation4], 32
        %v581 = vld [vmem:[%s580] sm:$0xff]
        %v583 = vsel %vm350, %v581, 0
        %585 = vmatprep.subr.mxu0 %v216
        %586 = vmatpush1.msra.mxu0 %v215
        %587 = vmatprep.subr.mxu0 %v219
        %588 = vmatpush1.msra.mxu0 %v218
        %589 = vmatprep.subr.mxu0 %v222
        %590 = vmatpush1.msra.mxu0 %v221
        %591 = vmatprep.subr.mxu0 %v225
        %592 = vmatpush1.msra.mxu0 %v224
        %593 = vmatprep.subr.mxu0 %v228
        %594 = vmatpush1.msra.mxu0 %v227
        %595 = vmatprep.subr.mxu0 %v231
        %596 = vmatpush1.msra.mxu0 %v230
        %597 = vmatprep.subr.mxu0 %v234
        %598 = vmatpush1.msra.mxu0 %v233
        %599 = vmatprep.subr.mxu0 %v237
        %600 = vmatpush1.msra.mxu0 %v236
        %601 = vmatprep.subr.mxu0 0.0
        %602 = vmatpush1.msra.mxu0 0.0
        %603 = vmatprep.subr.mxu0 0.0
        %604 = vmatpush1.msra.mxu0 0.0
        %605 = vmatprep.subr.mxu0 0.0
        %606 = vmatpush1.msra.mxu0 0.0
        %607 = vmatprep.subr.mxu0 0.0
        %608 = vmatpush1.msra.mxu0 0.0
        %609 = vmatprep.subr.mxu0 0.0
        %610 = vmatpush1.msra.mxu0 0.0
        %611 = vmatprep.subr.mxu0 0.0
        %612 = vmatpush1.msra.mxu0 0.0
        %613 = vmatprep.subr.mxu0 0.0
        %614 = vmatpush1.msra.mxu0 0.0
        %615 = vmatprep.subr.mxu0 0.0
        %616 = vmatpush1.msra.mxu0 0.0
        %617 = vmatprep.subr.mxu0 0.0
        %618 = vmatpush1.msra.mxu0 0.0
        %619 = vmatprep.subr.mxu0 0.0
        %620 = vmatpush1.msra.mxu0 0.0
        %621 = vmatprep.subr.mxu0 0.0
        %622 = vmatpush1.msra.mxu0 0.0
        %623 = vmatprep.subr.mxu0 0.0
        %624 = vmatpush1.msra.mxu0 0.0
        %625 = vmatprep.subr.mxu0 0.0
        %626 = vmatpush1.msra.mxu0 0.0
        %627 = vmatprep.subr.mxu0 0.0
        %628 = vmatpush1.msra.mxu0 0.0
        %629 = vmatprep.subr.mxu0 0.0
        %630 = vmatpush1.msra.mxu0 0.0
        %631 = vmatprep.subr.mxu0 0.0
        %632 = vmatpush1.msra.mxu0 0.0
        %633 = vmatprep.subr.mxu0 0.0
        %634 = vmatpush1.msra.mxu0 0.0
        %635 = vmatprep.subr.mxu0 0.0
        %636 = vmatpush1.msra.mxu0 0.0
        %637 = vmatprep.subr.mxu0 0.0
        %638 = vmatpush1.msra.mxu0 0.0
        %639 = vmatprep.subr.mxu0 0.0
        %640 = vmatpush1.msra.mxu0 0.0
        %641 = vmatprep.subr.mxu0 0.0
        %642 = vmatpush1.msra.mxu0 0.0
        %643 = vmatprep.subr.mxu0 0.0
        %644 = vmatpush1.msra.mxu0 0.0
        %645 = vmatprep.subr.mxu0 0.0
        %646 = vmatpush1.msra.mxu0 0.0
        %647 = vmatprep.subr.mxu0 0.0
        %648 = vmatpush1.msra.mxu0 0.0
        %649 = vmatprep.mubr.f32.mxu0 0.0
        %650 = vmatmul.mubr.f32.gmra.mrb[0].mxu0 %v583
        %v651 = vpop.f32.mrb[0].mxu0
        %v652 = vadd.f32 0.0, %v651
        %v653 = vpop.f32.mrb[0].mxu0
        %v654 = vadd.f32 0.0, %v653
        %655 = vdwg.mxu0
        %656 = vrot.lane.b32.xlu0 %v214, 16
        %v657 = vpop.permute.xlu0 %656
        %658 = vrot.lane.b32.xlu0 %v215, 16
        %v659 = vpop.permute.xlu0 %658
        %660 = vrot.lane.b32.xlu0 %v216, 16
        %v661 = vpop.permute.xlu0 %660
        %662 = vrot.lane.b32.xlu0 %v217, 16
        %v663 = vpop.permute.xlu0 %662
        %664 = vrot.lane.b32.xlu0 %v218, 16
        %v665 = vpop.permute.xlu0 %664
        %666 = vrot.lane.b32.xlu0 %v219, 16
        %v667 = vpop.permute.xlu0 %666
        %668 = vrot.lane.b32.xlu0 %v220, 16
        %v669 = vpop.permute.xlu0 %668
        %670 = vrot.lane.b32.xlu0 %v221, 16
        %v671 = vpop.permute.xlu0 %670
        %672 = vrot.lane.b32.xlu0 %v222, 16
        %v673 = vpop.permute.xlu0 %672
        %674 = vrot.lane.b32.xlu0 %v223, 16
        %v675 = vpop.permute.xlu0 %674
        %676 = vrot.lane.b32.xlu0 %v224, 16
        %v677 = vpop.permute.xlu0 %676
        %678 = vrot.lane.b32.xlu0 %v225, 16
        %v679 = vpop.permute.xlu0 %678
        %680 = vrot.lane.b32.xlu0 %v226, 16
        %v681 = vpop.permute.xlu0 %680
        %682 = vrot.lane.b32.xlu0 %v227, 16
        %v683 = vpop.permute.xlu0 %682
        %684 = vrot.lane.b32.xlu0 %v228, 16
        %v685 = vpop.permute.xlu0 %684
        %686 = vrot.lane.b32.xlu0 %v229, 16
        %v687 = vpop.permute.xlu0 %686
        %688 = vrot.lane.b32.xlu0 %v230, 16
        %v689 = vpop.permute.xlu0 %688
        %690 = vrot.lane.b32.xlu0 %v231, 16
        %v691 = vpop.permute.xlu0 %690
        %692 = vrot.lane.b32.xlu0 %v232, 16
        %v693 = vpop.permute.xlu0 %692
        %694 = vrot.lane.b32.xlu0 %v233, 16
        %v695 = vpop.permute.xlu0 %694
        %696 = vrot.lane.b32.xlu0 %v234, 16
        %v697 = vpop.permute.xlu0 %696
        %698 = vrot.lane.b32.xlu0 %v235, 16
        %v699 = vpop.permute.xlu0 %698
        %700 = vrot.lane.b32.xlu0 %v236, 16
        %v701 = vpop.permute.xlu0 %700
        %702 = vrot.lane.b32.xlu0 %v237, 16
        %v703 = vpop.permute.xlu0 %702
        %vm704 = vcmask 130048
        %v705 = vsel %vm704, %v657, %v659
        %v706 = vsel %vm704, %v659, %v661
        %v707 = vsel %vm704, %v663, %v665
        %v708 = vsel %vm704, %v665, %v667
        %v709 = vsel %vm704, %v669, %v671
        %v710 = vsel %vm704, %v671, %v673
        %v711 = vsel %vm704, %v675, %v677
        %v712 = vsel %vm704, %v677, %v679
        %v713 = vsel %vm704, %v681, %v683
        %v714 = vsel %vm704, %v683, %v685
        %v715 = vsel %vm704, %v687, %v689
        %v716 = vsel %vm704, %v689, %v691
        %v717 = vsel %vm704, %v693, %v695
        %v718 = vsel %vm704, %v695, %v697
        %v719 = vsel %vm704, %v699, %v701
        %v720 = vsel %vm704, %v701, %v703
        %v738 = vsel %vm350, %v240, 0
        %740 = vmatprep.subr.mxu0 %v706
        %741 = vmatpush1.msra.mxu0 %v705
        %742 = vmatprep.subr.mxu0 %v708
        %743 = vmatpush1.msra.mxu0 %v707
        %744 = vmatprep.subr.mxu0 %v710
        %745 = vmatpush1.msra.mxu0 %v709
        %746 = vmatprep.subr.mxu0 %v712
        %747 = vmatpush1.msra.mxu0 %v711
        %748 = vmatprep.subr.mxu0 %v714
        %749 = vmatpush1.msra.mxu0 %v713
        %750 = vmatprep.subr.mxu0 %v716
        %751 = vmatpush1.msra.mxu0 %v715
        %752 = vmatprep.subr.mxu0 %v718
        %753 = vmatpush1.msra.mxu0 %v717
        %754 = vmatprep.subr.mxu0 %v720
        %755 = vmatpush1.msra.mxu0 %v719
        %756 = vmatprep.subr.mxu0 0.0
        %757 = vmatpush1.msra.mxu0 0.0
        %758 = vmatprep.subr.mxu0 0.0
        %759 = vmatpush1.msra.mxu0 0.0
        %760 = vmatprep.subr.mxu0 0.0
        %761 = vmatpush1.msra.mxu0 0.0
        %762 = vmatprep.subr.mxu0 0.0
        %763 = vmatpush1.msra.mxu0 0.0
        %764 = vmatprep.subr.mxu0 0.0
        %765 = vmatpush1.msra.mxu0 0.0
        %766 = vmatprep.subr.mxu0 0.0
        %767 = vmatpush1.msra.mxu0 0.0
        %768 = vmatprep.subr.mxu0 0.0
        %769 = vmatpush1.msra.mxu0 0.0
        %770 = vmatprep.subr.mxu0 0.0
        %771 = vmatpush1.msra.mxu0 0.0
        %772 = vmatprep.subr.mxu0 0.0
        %773 = vmatpush1.msra.mxu0 0.0
        %774 = vmatprep.subr.mxu0 0.0
        %775 = vmatpush1.msra.mxu0 0.0
        %776 = vmatprep.subr.mxu0 0.0
        %777 = vmatpush1.msra.mxu0 0.0
        %778 = vmatprep.subr.mxu0 0.0
        %779 = vmatpush1.msra.mxu0 0.0
        %780 = vmatprep.subr.mxu0 0.0
        %781 = vmatpush1.msra.mxu0 0.0
        %782 = vmatprep.subr.mxu0 0.0
        %783 = vmatpush1.msra.mxu0 0.0
        %784 = vmatprep.subr.mxu0 0.0
        %785 = vmatpush1.msra.mxu0 0.0
        %786 = vmatprep.subr.mxu0 0.0
        %787 = vmatpush1.msra.mxu0 0.0
        %788 = vmatprep.subr.mxu0 0.0
        %789 = vmatpush1.msra.mxu0 0.0
        %790 = vmatprep.subr.mxu0 0.0
        %791 = vmatpush1.msra.mxu0 0.0
        %792 = vmatprep.subr.mxu0 0.0
        %793 = vmatpush1.msra.mxu0 0.0
        %794 = vmatprep.subr.mxu0 0.0
        %795 = vmatpush1.msra.mxu0 0.0
        %796 = vmatprep.subr.mxu0 0.0
        %797 = vmatpush1.msra.mxu0 0.0
        %798 = vmatprep.subr.mxu0 0.0
        %799 = vmatpush1.msra.mxu0 0.0
        %800 = vmatprep.subr.mxu0 0.0
        %801 = vmatpush1.msra.mxu0 0.0
        %802 = vmatprep.subr.mxu0 0.0
        %803 = vmatpush1.msra.mxu0 0.0
        %804 = vmatprep.mubr.f32.mxu0 0.0
        %805 = vmatmul.mubr.f32.gmra.mrb[0].mxu0 %v738
        %v806 = vpop.f32.mrb[0].mxu0
        %v807 = vadd.f32 %v652, %v806
        %v808 = vpop.f32.mrb[0].mxu0
        %v809 = vadd.f32 %v654, %v808
        %810 = vdwg.mxu0
        %v811 = vld [vmem:[#allocation2 + $0x8] sm:$0xff]
        %v812 = vld [vmem:[#allocation2 + $0x10] sm:$0xff]
        %v813 = vld [vmem:[#allocation2 + $0x18] sm:$0xff]
        %v814 = vld [vmem:[#allocation2 + $0x28] sm:$0xff]
        %v815 = vld [vmem:[#allocation2 + $0x30] sm:$0xff]
        %v816 = vld [vmem:[#allocation2 + $0x38] sm:$0xff]
        %v817 = vld [vmem:[#allocation2 + $0x48] sm:$0xff]
        %v818 = vld [vmem:[#allocation2 + $0x50] sm:$0xff]
        %v819 = vld [vmem:[#allocation2 + $0x58] sm:$0xff]
        %v820 = vld [vmem:[#allocation2 + $0x68] sm:$0xff]
        %v821 = vld [vmem:[#allocation2 + $0x70] sm:$0xff]
        %v822 = vld [vmem:[#allocation2 + $0x78] sm:$0xff]
        %v823 = vld [vmem:[#allocation2 + $0x88] sm:$0xff]
        %v824 = vld [vmem:[#allocation2 + $0x90] sm:$0xff]
        %v825 = vld [vmem:[#allocation2 + $0x98] sm:$0xff]
        %v826 = vld [vmem:[#allocation2 + $0xa8] sm:$0xff]
        %v827 = vld [vmem:[#allocation2 + $0xb0] sm:$0xff]
        %v828 = vld [vmem:[#allocation2 + $0xb8] sm:$0xff]
        %v829 = vld [vmem:[#allocation2 + $0xc8] sm:$0xff]
        %v830 = vld [vmem:[#allocation2 + $0xd0] sm:$0xff]
        %v831 = vld [vmem:[#allocation2 + $0xd8] sm:$0xff]
        %v832 = vld [vmem:[#allocation2 + $0xe8] sm:$0xff]
        %v833 = vld [vmem:[#allocation2 + $0xf0] sm:$0xff]
        %v834 = vld [vmem:[#allocation2 + $0xf8] sm:$0xff]
        %s835 = scalar_lea.vmem [#allocation4], 40
        %v836 = vld [vmem:[%s835] sm:$0xff]
        %861 = vrot.lane.b32.xlu0 %v811, 127
        %v862 = vpop.permute.xlu0 %861
        %863 = vrot.lane.b32.xlu0 %v812, 127
        %v864 = vpop.permute.xlu0 %863
        %865 = vrot.lane.b32.xlu0 %v813, 127
        %v866 = vpop.permute.xlu0 %865
        %867 = vrot.lane.b32.xlu0 %v814, 127
        %v868 = vpop.permute.xlu0 %867
        %869 = vrot.lane.b32.xlu0 %v815, 127
        %v870 = vpop.permute.xlu0 %869
        %871 = vrot.lane.b32.xlu0 %v816, 127
        %v872 = vpop.permute.xlu0 %871
        %873 = vrot.lane.b32.xlu0 %v817, 127
        %v874 = vpop.permute.xlu0 %873
        %875 = vrot.lane.b32.xlu0 %v818, 127
        %v876 = vpop.permute.xlu0 %875
        %877 = vrot.lane.b32.xlu0 %v819, 127
        %v878 = vpop.permute.xlu0 %877
        %879 = vrot.lane.b32.xlu0 %v820, 127
        %v880 = vpop.permute.xlu0 %879
        %881 = vrot.lane.b32.xlu0 %v821, 127
        %v882 = vpop.permute.xlu0 %881
        %883 = vrot.lane.b32.xlu0 %v822, 127
        %v884 = vpop.permute.xlu0 %883
        %885 = vrot.lane.b32.xlu0 %v823, 127
        %v886 = vpop.permute.xlu0 %885
        %887 = vrot.lane.b32.xlu0 %v824, 127
        %v888 = vpop.permute.xlu0 %887
        %889 = vrot.lane.b32.xlu0 %v825, 127
        %v890 = vpop.permute.xlu0 %889
        %891 = vrot.lane.b32.xlu0 %v826, 127
        %v892 = vpop.permute.xlu0 %891
        %893 = vrot.lane.b32.xlu0 %v827, 127
        %v894 = vpop.permute.xlu0 %893
        %895 = vrot.lane.b32.xlu0 %v828, 127
        %v896 = vpop.permute.xlu0 %895
        %897 = vrot.lane.b32.xlu0 %v829, 127
        %v898 = vpop.permute.xlu0 %897
        %899 = vrot.lane.b32.xlu0 %v830, 127
        %v900 = vpop.permute.xlu0 %899
        %901 = vrot.lane.b32.xlu0 %v831, 127
        %v902 = vpop.permute.xlu0 %901
        %903 = vrot.lane.b32.xlu0 %v832, 127
        %v904 = vpop.permute.xlu0 %903
        %905 = vrot.lane.b32.xlu0 %v833, 127
        %v906 = vpop.permute.xlu0 %905
        %907 = vrot.lane.b32.xlu0 %v834, 127
        %v908 = vpop.permute.xlu0 %907
        %vm909 = vcmask 1039360
        %v910 = vsel %vm909, %v862, %v864
        %v911 = vsel %vm909, %v864, %v866
        %v912 = vsel %vm909, %v868, %v870
        %v913 = vsel %vm909, %v870, %v872
        %v914 = vsel %vm909, %v874, %v876
        %v915 = vsel %vm909, %v876, %v878
        %v916 = vsel %vm909, %v880, %v882
        %v917 = vsel %vm909, %v882, %v884
        %v918 = vsel %vm909, %v886, %v888
        %v919 = vsel %vm909, %v888, %v890
        %v920 = vsel %vm909, %v892, %v894
        %v921 = vsel %vm909, %v894, %v896
        %v922 = vsel %vm909, %v898, %v900
        %v923 = vsel %vm909, %v900, %v902
        %v924 = vsel %vm909, %v904, %v906
        %v925 = vsel %vm909, %v906, %v908
        %v943 = vsel %vm350, %v836, 0
        %945 = vmatprep.subr.mxu0 %v911
        %946 = vmatpush1.msra.mxu0 %v910
        %947 = vmatprep.subr.mxu0 %v913
        %948 = vmatpush1.msra.mxu0 %v912
        %949 = vmatprep.subr.mxu0 %v915
        %950 = vmatpush1.msra.mxu0 %v914
        %951 = vmatprep.subr.mxu0 %v917
        %952 = vmatpush1.msra.mxu0 %v916
        %953 = vmatprep.subr.mxu0 %v919
        %954 = vmatpush1.msra.mxu0 %v918
        %955 = vmatprep.subr.mxu0 %v921
        %956 = vmatpush1.msra.mxu0 %v920
        %957 = vmatprep.subr.mxu0 %v923
        %958 = vmatpush1.msra.mxu0 %v922
        %959 = vmatprep.subr.mxu0 %v925
        %960 = vmatpush1.msra.mxu0 %v924
        %961 = vmatprep.subr.mxu0 0.0
        %962 = vmatpush1.msra.mxu0 0.0
        %963 = vmatprep.subr.mxu0 0.0
        %964 = vmatpush1.msra.mxu0 0.0
        %965 = vmatprep.subr.mxu0 0.0
        %966 = vmatpush1.msra.mxu0 0.0
        %967 = vmatprep.subr.mxu0 0.0
        %968 = vmatpush1.msra.mxu0 0.0
        %969 = vmatprep.subr.mxu0 0.0
        %970 = vmatpush1.msra.mxu0 0.0
        %971 = vmatprep.subr.mxu0 0.0
        %972 = vmatpush1.msra.mxu0 0.0
        %973 = vmatprep.subr.mxu0 0.0
        %974 = vmatpush1.msra.mxu0 0.0
        %975 = vmatprep.subr.mxu0 0.0
        %976 = vmatpush1.msra.mxu0 0.0
        %977 = vmatprep.subr.mxu0 0.0
        %978 = vmatpush1.msra.mxu0 0.0
        %979 = vmatprep.subr.mxu0 0.0
        %980 = vmatpush1.msra.mxu0 0.0
        %981 = vmatprep.subr.mxu0 0.0
        %982 = vmatpush1.msra.mxu0 0.0
        %983 = vmatprep.subr.mxu0 0.0
        %984 = vmatpush1.msra.mxu0 0.0
        %985 = vmatprep.subr.mxu0 0.0
        %986 = vmatpush1.msra.mxu0 0.0
        %987 = vmatprep.subr.mxu0 0.0
        %988 = vmatpush1.msra.mxu0 0.0
        %989 = vmatprep.subr.mxu0 0.0
        %990 = vmatpush1.msra.mxu0 0.0
        %991 = vmatprep.subr.mxu0 0.0
        %992 = vmatpush1.msra.mxu0 0.0
        %993 = vmatprep.subr.mxu0 0.0
        %994 = vmatpush1.msra.mxu0 0.0
        %995 = vmatprep.subr.mxu0 0.0
        %996 = vmatpush1.msra.mxu0 0.0
        %997 = vmatprep.subr.mxu0 0.0
        %998 = vmatpush1.msra.mxu0 0.0
        %999 = vmatprep.subr.mxu0 0.0
        %1000 = vmatpush1.msra.mxu0 0.0
        %1001 = vmatprep.subr.mxu0 0.0
        %1002 = vmatpush1.msra.mxu0 0.0
        %1003 = vmatprep.subr.mxu0 0.0
        %1004 = vmatpush1.msra.mxu0 0.0
        %1005 = vmatprep.subr.mxu0 0.0
        %1006 = vmatpush1.msra.mxu0 0.0
        %1007 = vmatprep.subr.mxu0 0.0
        %1008 = vmatpush1.msra.mxu0 0.0
        %1009 = vmatprep.mubr.f32.mxu0 0.0
        %1010 = vmatmul.mubr.f32.gmra.mrb[0].mxu0 %v943
        %v1011 = vpop.f32.mrb[0].mxu0
        %v1012 = vadd.f32 0.0, %v1011
        %v1013 = vpop.f32.mrb[0].mxu0
        %v1014 = vadd.f32 0.0, %v1013
        %1015 = vdwg.mxu0
        %1016 = vrot.lane.b32.xlu0 %v214, 15
        %v1017 = vpop.permute.xlu0 %1016
        %1018 = vrot.lane.b32.xlu0 %v215, 15
        %v1019 = vpop.permute.xlu0 %1018
        %1020 = vrot.lane.b32.xlu0 %v216, 15
        %v1021 = vpop.permute.xlu0 %1020
        %1022 = vrot.lane.b32.xlu0 %v217, 15
        %v1023 = vpop.permute.xlu0 %1022
        %1024 = vrot.lane.b32.xlu0 %v218, 15
        %v1025 = vpop.permute.xlu0 %1024
        %1026 = vrot.lane.b32.xlu0 %v219, 15
        %v1027 = vpop.permute.xlu0 %1026
        %1028 = vrot.lane.b32.xlu0 %v220, 15
        %v1029 = vpop.permute.xlu0 %1028
        %1030 = vrot.lane.b32.xlu0 %v221, 15
        %v1031 = vpop.permute.xlu0 %1030
        %1032 = vrot.lane.b32.xlu0 %v222, 15
        %v1033 = vpop.permute.xlu0 %1032
        %1034 = vrot.lane.b32.xlu0 %v223, 15
        %v1035 = vpop.permute.xlu0 %1034
        %1036 = vrot.lane.b32.xlu0 %v224, 15
        %v1037 = vpop.permute.xlu0 %1036
        %1038 = vrot.lane.b32.xlu0 %v225, 15
        %v1039 = vpop.permute.xlu0 %1038
        %1040 = vrot.lane.b32.xlu0 %v226, 15
        %v1041 = vpop.permute.xlu0 %1040
        %1042 = vrot.lane.b32.xlu0 %v227, 15
        %v1043 = vpop.permute.xlu0 %1042
        %1044 = vrot.lane.b32.xlu0 %v228, 15
        %v1045 = vpop.permute.xlu0 %1044
        %1046 = vrot.lane.b32.xlu0 %v229, 15
        %v1047 = vpop.permute.xlu0 %1046
        %1048 = vrot.lane.b32.xlu0 %v230, 15
        %v1049 = vpop.permute.xlu0 %1048
        %1050 = vrot.lane.b32.xlu0 %v231, 15
        %v1051 = vpop.permute.xlu0 %1050
        %1052 = vrot.lane.b32.xlu0 %v232, 15
        %v1053 = vpop.permute.xlu0 %1052
        %1054 = vrot.lane.b32.xlu0 %v233, 15
        %v1055 = vpop.permute.xlu0 %1054
        %1056 = vrot.lane.b32.xlu0 %v234, 15
        %v1057 = vpop.permute.xlu0 %1056
        %1058 = vrot.lane.b32.xlu0 %v235, 15
        %v1059 = vpop.permute.xlu0 %1058
        %1060 = vrot.lane.b32.xlu0 %v236, 15
        %v1061 = vpop.permute.xlu0 %1060
        %1062 = vrot.lane.b32.xlu0 %v237, 15
        %v1063 = vpop.permute.xlu0 %1062
        %vm1064 = vcmask 121856
        %v1065 = vsel %vm1064, %v1017, %v1019
        %v1066 = vsel %vm1064, %v1019, %v1021
        %v1067 = vsel %vm1064, %v1023, %v1025
        %v1068 = vsel %vm1064, %v1025, %v1027
        %v1069 = vsel %vm1064, %v1029, %v1031
        %v1070 = vsel %vm1064, %v1031, %v1033
        %v1071 = vsel %vm1064, %v1035, %v1037
        %v1072 = vsel %vm1064, %v1037, %v1039
        %v1073 = vsel %vm1064, %v1041, %v1043
        %v1074 = vsel %vm1064, %v1043, %v1045
        %v1075 = vsel %vm1064, %v1047, %v1049
        %v1076 = vsel %vm1064, %v1049, %v1051
        %v1077 = vsel %vm1064, %v1053, %v1055
        %v1078 = vsel %vm1064, %v1055, %v1057
        %v1079 = vsel %vm1064, %v1059, %v1061
        %v1080 = vsel %vm1064, %v1061, %v1063
        %v1098 = vsel %vm350, %v242, 0
        %1100 = vmatprep.subr.mxu0 %v1066
        %1101 = vmatpush1.msra.mxu0 %v1065
        %1102 = vmatprep.subr.mxu0 %v1068
        %1103 = vmatpush1.msra.mxu0 %v1067
        %1104 = vmatprep.subr.mxu0 %v1070
        %1105 = vmatpush1.msra.mxu0 %v1069
        %1106 = vmatprep.subr.mxu0 %v1072
        %1107 = vmatpush1.msra.mxu0 %v1071
        %1108 = vmatprep.subr.mxu0 %v1074
        %1109 = vmatpush1.msra.mxu0 %v1073
        %1110 = vmatprep.subr.mxu0 %v1076
        %1111 = vmatpush1.msra.mxu0 %v1075
        %1112 = vmatprep.subr.mxu0 %v1078
        %1113 = vmatpush1.msra.mxu0 %v1077
        %1114 = vmatprep.subr.mxu0 %v1080
        %1115 = vmatpush1.msra.mxu0 %v1079
        %1116 = vmatprep.subr.mxu0 0.0
        %1117 = vmatpush1.msra.mxu0 0.0
        %1118 = vmatprep.subr.mxu0 0.0
        %1119 = vmatpush1.msra.mxu0 0.0
        %1120 = vmatprep.subr.mxu0 0.0
        %1121 = vmatpush1.msra.mxu0 0.0
        %1122 = vmatprep.subr.mxu0 0.0
        %1123 = vmatpush1.msra.mxu0 0.0
        %1124 = vmatprep.subr.mxu0 0.0
        %1125 = vmatpush1.msra.mxu0 0.0
        %1126 = vmatprep.subr.mxu0 0.0
        %1127 = vmatpush1.msra.mxu0 0.0
        %1128 = vmatprep.subr.mxu0 0.0
        %1129 = vmatpush1.msra.mxu0 0.0
        %1130 = vmatprep.subr.mxu0 0.0
        %1131 = vmatpush1.msra.mxu0 0.0
        %1132 = vmatprep.subr.mxu0 0.0
        %1133 = vmatpush1.msra.mxu0 0.0
        %1134 = vmatprep.subr.mxu0 0.0
        %1135 = vmatpush1.msra.mxu0 0.0
        %1136 = vmatprep.subr.mxu0 0.0
        %1137 = vmatpush1.msra.mxu0 0.0
        %1138 = vmatprep.subr.mxu0 0.0
        %1139 = vmatpush1.msra.mxu0 0.0
        %1140 = vmatprep.subr.mxu0 0.0
        %1141 = vmatpush1.msra.mxu0 0.0
        %1142 = vmatprep.subr.mxu0 0.0
        %1143 = vmatpush1.msra.mxu0 0.0
        %1144 = vmatprep.subr.mxu0 0.0
        %1145 = vmatpush1.msra.mxu0 0.0
        %1146 = vmatprep.subr.mxu0 0.0
        %1147 = vmatpush1.msra.mxu0 0.0
        %1148 = vmatprep.subr.mxu0 0.0
        %1149 = vmatpush1.msra.mxu0 0.0
        %1150 = vmatprep.subr.mxu0 0.0
        %1151 = vmatpush1.msra.mxu0 0.0
        %1152 = vmatprep.subr.mxu0 0.0
        %1153 = vmatpush1.msra.mxu0 0.0
        %1154 = vmatprep.subr.mxu0 0.0
        %1155 = vmatpush1.msra.mxu0 0.0
        %1156 = vmatprep.subr.mxu0 0.0
        %1157 = vmatpush1.msra.mxu0 0.0
        %1158 = vmatprep.subr.mxu0 0.0
        %1159 = vmatpush1.msra.mxu0 0.0
        %1160 = vmatprep.subr.mxu0 0.0
        %1161 = vmatpush1.msra.mxu0 0.0
        %1162 = vmatprep.subr.mxu0 0.0
        %1163 = vmatpush1.msra.mxu0 0.0
        %1164 = vmatprep.mubr.f32.mxu0 0.0
        %1165 = vmatmul.mubr.f32.gmra.mrb[0].mxu0 %v1098
        %v1166 = vpop.f32.mrb[0].mxu0
        %v1167 = vadd.f32 %v1012, %v1166
        %v1168 = vpop.f32.mrb[0].mxu0
        %v1169 = vadd.f32 %v1014, %v1168
        %1170 = vdwg.mxu0
        %s1171 = scalar_lea.vmem [#allocation4], 48
        %v1172 = vld [vmem:[%s1171] sm:$0xff]
        %1173 = vrot.lane.b32.xlu0 %v811, 113
        %v1174 = vpop.permute.xlu0 %1173
        %1175 = vrot.lane.b32.xlu0 %v812, 113
        %v1176 = vpop.permute.xlu0 %1175
        %1177 = vrot.lane.b32.xlu0 %v813, 113
        %v1178 = vpop.permute.xlu0 %1177
        %1179 = vrot.lane.b32.xlu0 %v814, 113
        %v1180 = vpop.permute.xlu0 %1179
        %1181 = vrot.lane.b32.xlu0 %v815, 113
        %v1182 = vpop.permute.xlu0 %1181
        %1183 = vrot.lane.b32.xlu0 %v816, 113
        %v1184 = vpop.permute.xlu0 %1183
        %1185 = vrot.lane.b32.xlu0 %v817, 113
        %v1186 = vpop.permute.xlu0 %1185
        %1187 = vrot.lane.b32.xlu0 %v818, 113
        %v1188 = vpop.permute.xlu0 %1187
        %1189 = vrot.lane.b32.xlu0 %v819, 113
        %v1190 = vpop.permute.xlu0 %1189
        %1191 = vrot.lane.b32.xlu0 %v820, 113
        %v1192 = vpop.permute.xlu0 %1191
        %1193 = vrot.lane.b32.xlu0 %v821, 113
        %v1194 = vpop.permute.xlu0 %1193
        %1195 = vrot.lane.b32.xlu0 %v822, 113
        %v1196 = vpop.permute.xlu0 %1195
        %1197 = vrot.lane.b32.xlu0 %v823, 113
        %v1198 = vpop.permute.xlu0 %1197
        %1199 = vrot.lane.b32.xlu0 %v824, 113
        %v1200 = vpop.permute.xlu0 %1199
        %1201 = vrot.lane.b32.xlu0 %v825, 113
        %v1202 = vpop.permute.xlu0 %1201
        %1203 = vrot.lane.b32.xlu0 %v826, 113
        %v1204 = vpop.permute.xlu0 %1203
        %1205 = vrot.lane.b32.xlu0 %v827, 113
        %v1206 = vpop.permute.xlu0 %1205
        %1207 = vrot.lane.b32.xlu0 %v828, 113
        %v1208 = vpop.permute.xlu0 %1207
        %1209 = vrot.lane.b32.xlu0 %v829, 113
        %v1210 = vpop.permute.xlu0 %1209
        %1211 = vrot.lane.b32.xlu0 %v830, 113
        %v1212 = vpop.permute.xlu0 %1211
        %1213 = vrot.lane.b32.xlu0 %v831, 113
        %v1214 = vpop.permute.xlu0 %1213
        %1215 = vrot.lane.b32.xlu0 %v832, 113
        %v1216 = vpop.permute.xlu0 %1215
        %1217 = vrot.lane.b32.xlu0 %v833, 113
        %v1218 = vpop.permute.xlu0 %1217
        %1219 = vrot.lane.b32.xlu0 %v834, 113
        %v1220 = vpop.permute.xlu0 %1219
        %vm1221 = vcmask 924672
        %v1222 = vsel %vm1221, %v1174, %v1176
        %v1223 = vsel %vm1221, %v1176, %v1178
        %v1224 = vsel %vm1221, %v1180, %v1182
        %v1225 = vsel %vm1221, %v1182, %v1184
        %v1226 = vsel %vm1221, %v1186, %v1188
        %v1227 = vsel %vm1221, %v1188, %v1190
        %v1228 = vsel %vm1221, %v1192, %v1194
        %v1229 = vsel %vm1221, %v1194, %v1196
        %v1230 = vsel %vm1221, %v1198, %v1200
        %v1231 = vsel %vm1221, %v1200, %v1202
        %v1232 = vsel %vm1221, %v1204, %v1206
        %v1233 = vsel %vm1221, %v1206, %v1208
        %v1234 = vsel %vm1221, %v1210, %v1212
        %v1235 = vsel %vm1221, %v1212, %v1214
        %v1236 = vsel %vm1221, %v1216, %v1218
        %v1237 = vsel %vm1221, %v1218, %v1220
        %v1255 = vsel %vm350, %v1172, 0
        %1257 = vmatprep.subr.mxu0 %v1223
        %1258 = vmatpush1.msra.mxu0 %v1222
        %1259 = vmatprep.subr.mxu0 %v1225
        %1260 = vmatpush1.msra.mxu0 %v1224
        %1261 = vmatprep.subr.mxu0 %v1227
        %1262 = vmatpush1.msra.mxu0 %v1226
        %1263 = vmatprep.subr.mxu0 %v1229
        %1264 = vmatpush1.msra.mxu0 %v1228
        %1265 = vmatprep.subr.mxu0 %v1231
        %1266 = vmatpush1.msra.mxu0 %v1230
        %1267 = vmatprep.subr.mxu0 %v1233
        %1268 = vmatpush1.msra.mxu0 %v1232
        %1269 = vmatprep.subr.mxu0 %v1235
        %1270 = vmatpush1.msra.mxu0 %v1234
        %1271 = vmatprep.subr.mxu0 %v1237
        %1272 = vmatpush1.msra.mxu0 %v1236
        %1273 = vmatprep.subr.mxu0 0.0
        %1274 = vmatpush1.msra.mxu0 0.0
        %1275 = vmatprep.subr.mxu0 0.0
        %1276 = vmatpush1.msra.mxu0 0.0
        %1277 = vmatprep.subr.mxu0 0.0
        %1278 = vmatpush1.msra.mxu0 0.0
        %1279 = vmatprep.subr.mxu0 0.0
        %1280 = vmatpush1.msra.mxu0 0.0
        %1281 = vmatprep.subr.mxu0 0.0
        %1282 = vmatpush1.msra.mxu0 0.0
        %1283 = vmatprep.subr.mxu0 0.0
        %1284 = vmatpush1.msra.mxu0 0.0
        %1285 = vmatprep.subr.mxu0 0.0
        %1286 = vmatpush1.msra.mxu0 0.0
        %1287 = vmatprep.subr.mxu0 0.0
        %1288 = vmatpush1.msra.mxu0 0.0
        %1289 = vmatprep.subr.mxu0 0.0
        %1290 = vmatpush1.msra.mxu0 0.0
        %1291 = vmatprep.subr.mxu0 0.0
        %1292 = vmatpush1.msra.mxu0 0.0
        %1293 = vmatprep.subr.mxu0 0.0
        %1294 = vmatpush1.msra.mxu0 0.0
        %1295 = vmatprep.subr.mxu0 0.0
        %1296 = vmatpush1.msra.mxu0 0.0
        %1297 = vmatprep.subr.mxu0 0.0
        %1298 = vmatpush1.msra.mxu0 0.0
        %1299 = vmatprep.subr.mxu0 0.0
        %1300 = vmatpush1.msra.mxu0 0.0
        %1301 = vmatprep.subr.mxu0 0.0
        %1302 = vmatpush1.msra.mxu0 0.0
        %1303 = vmatprep.subr.mxu0 0.0
        %1304 = vmatpush1.msra.mxu0 0.0
        %1305 = vmatprep.subr.mxu0 0.0
        %1306 = vmatpush1.msra.mxu0 0.0
        %1307 = vmatprep.subr.mxu0 0.0
        %1308 = vmatpush1.msra.mxu0 0.0
        %1309 = vmatprep.subr.mxu0 0.0
        %1310 = vmatpush1.msra.mxu0 0.0
        %1311 = vmatprep.subr.mxu0 0.0
        %1312 = vmatpush1.msra.mxu0 0.0
        %1313 = vmatprep.subr.mxu0 0.0
        %1314 = vmatpush1.msra.mxu0 0.0
        %1315 = vmatprep.subr.mxu0 0.0
        %1316 = vmatpush1.msra.mxu0 0.0
        %1317 = vmatprep.subr.mxu0 0.0
        %1318 = vmatpush1.msra.mxu0 0.0
        %1319 = vmatprep.subr.mxu0 0.0
        %1320 = vmatpush1.msra.mxu0 0.0
        %1321 = vmatprep.mubr.f32.mxu0 0.0
        %1322 = vmatmul.mubr.f32.gmra.mrb[0].mxu0 %v1255
        %v1323 = vpop.f32.mrb[0].mxu0
        %v1324 = vadd.f32 0.0, %v1323
        %v1325 = vpop.f32.mrb[0].mxu0
        %v1326 = vadd.f32 0.0, %v1325
        %1327 = vdwg.mxu0
        %v1328 = vadd.f32 %v576, %v1324
        %v1329 = vadd.f32 %v578, %v1326
        %s1330 = scalar_lea.vmem [#allocation4], 56
        %v1331 = vld [vmem:[%s1330] sm:$0xff]
        %1332 = vrot.lane.b32.xlu0 %v811, 112
        %v1333 = vpop.permute.xlu0 %1332
        %1334 = vrot.lane.b32.xlu0 %v812, 112
        %v1335 = vpop.permute.xlu0 %1334
        %1336 = vrot.lane.b32.xlu0 %v813, 112
        %v1337 = vpop.permute.xlu0 %1336
        %1338 = vrot.lane.b32.xlu0 %v814, 112
        %v1339 = vpop.permute.xlu0 %1338
        %1340 = vrot.lane.b32.xlu0 %v815, 112
        %v1341 = vpop.permute.xlu0 %1340
        %1342 = vrot.lane.b32.xlu0 %v816, 112
        %v1343 = vpop.permute.xlu0 %1342
        %1344 = vrot.lane.b32.xlu0 %v817, 112
        %v1345 = vpop.permute.xlu0 %1344
        %1346 = vrot.lane.b32.xlu0 %v818, 112
        %v1347 = vpop.permute.xlu0 %1346
        %1348 = vrot.lane.b32.xlu0 %v819, 112
        %v1349 = vpop.permute.xlu0 %1348
        %1350 = vrot.lane.b32.xlu0 %v820, 112
        %v1351 = vpop.permute.xlu0 %1350
        %1352 = vrot.lane.b32.xlu0 %v821, 112
        %v1353 = vpop.permute.xlu0 %1352
        %1354 = vrot.lane.b32.xlu0 %v822, 112
        %v1355 = vpop.permute.xlu0 %1354
        %1356 = vrot.lane.b32.xlu0 %v823, 112
        %v1357 = vpop.permute.xlu0 %1356
        %1358 = vrot.lane.b32.xlu0 %v824, 112
        %v1359 = vpop.permute.xlu0 %1358
        %1360 = vrot.lane.b32.xlu0 %v825, 112
        %v1361 = vpop.permute.xlu0 %1360
        %1362 = vrot.lane.b32.xlu0 %v826, 112
        %v1363 = vpop.permute.xlu0 %1362
        %1364 = vrot.lane.b32.xlu0 %v827, 112
        %v1365 = vpop.permute.xlu0 %1364
        %1366 = vrot.lane.b32.xlu0 %v828, 112
        %v1367 = vpop.permute.xlu0 %1366
        %1368 = vrot.lane.b32.xlu0 %v829, 112
        %v1369 = vpop.permute.xlu0 %1368
        %1370 = vrot.lane.b32.xlu0 %v830, 112
        %v1371 = vpop.permute.xlu0 %1370
        %1372 = vrot.lane.b32.xlu0 %v831, 112
        %v1373 = vpop.permute.xlu0 %1372
        %1374 = vrot.lane.b32.xlu0 %v832, 112
        %v1375 = vpop.permute.xlu0 %1374
        %1376 = vrot.lane.b32.xlu0 %v833, 112
        %v1377 = vpop.permute.xlu0 %1376
        %1378 = vrot.lane.b32.xlu0 %v834, 112
        %v1379 = vpop.permute.xlu0 %1378
        %vm1380 = vcmask 916480
        %v1381 = vsel %vm1380, %v1333, %v1335
        %v1382 = vsel %vm1380, %v1335, %v1337
        %v1383 = vsel %vm1380, %v1339, %v1341
        %v1384 = vsel %vm1380, %v1341, %v1343
        %v1385 = vsel %vm1380, %v1345, %v1347
        %v1386 = vsel %vm1380, %v1347, %v1349
        %v1387 = vsel %vm1380, %v1351, %v1353
        %v1388 = vsel %vm1380, %v1353, %v1355
        %v1389 = vsel %vm1380, %v1357, %v1359
        %v1390 = vsel %vm1380, %v1359, %v1361
        %v1391 = vsel %vm1380, %v1363, %v1365
        %v1392 = vsel %vm1380, %v1365, %v1367
        %v1393 = vsel %vm1380, %v1369, %v1371
        %v1394 = vsel %vm1380, %v1371, %v1373
        %v1395 = vsel %vm1380, %v1375, %v1377
        %v1396 = vsel %vm1380, %v1377, %v1379
        %v1414 = vsel %vm350, %v1331, 0
        %1416 = vmatprep.subr.mxu0 %v1382
        %1417 = vmatpush1.msra.mxu0 %v1381
        %1418 = vmatprep.subr.mxu0 %v1384
        %1419 = vmatpush1.msra.mxu0 %v1383
        %1420 = vmatprep.subr.mxu0 %v1386
        %1421 = vmatpush1.msra.mxu0 %v1385
        %1422 = vmatprep.subr.mxu0 %v1388
        %1423 = vmatpush1.msra.mxu0 %v1387
        %1424 = vmatprep.subr.mxu0 %v1390
        %1425 = vmatpush1.msra.mxu0 %v1389
        %1426 = vmatprep.subr.mxu0 %v1392
        %1427 = vmatpush1.msra.mxu0 %v1391
        %1428 = vmatprep.subr.mxu0 %v1394
        %1429 = vmatpush1.msra.mxu0 %v1393
        %1430 = vmatprep.subr.mxu0 %v1396
        %1431 = vmatpush1.msra.mxu0 %v1395
        %1432 = vmatprep.subr.mxu0 0.0
        %1433 = vmatpush1.msra.mxu0 0.0
        %1434 = vmatprep.subr.mxu0 0.0
        %1435 = vmatpush1.msra.mxu0 0.0
        %1436 = vmatprep.subr.mxu0 0.0
        %1437 = vmatpush1.msra.mxu0 0.0
        %1438 = vmatprep.subr.mxu0 0.0
        %1439 = vmatpush1.msra.mxu0 0.0
        %1440 = vmatprep.subr.mxu0 0.0
        %1441 = vmatpush1.msra.mxu0 0.0
        %1442 = vmatprep.subr.mxu0 0.0
        %1443 = vmatpush1.msra.mxu0 0.0
        %1444 = vmatprep.subr.mxu0 0.0
        %1445 = vmatpush1.msra.mxu0 0.0
        %1446 = vmatprep.subr.mxu0 0.0
        %1447 = vmatpush1.msra.mxu0 0.0
        %1448 = vmatprep.subr.mxu0 0.0
        %1449 = vmatpush1.msra.mxu0 0.0
        %1450 = vmatprep.subr.mxu0 0.0
        %1451 = vmatpush1.msra.mxu0 0.0
        %1452 = vmatprep.subr.mxu0 0.0
        %1453 = vmatpush1.msra.mxu0 0.0
        %1454 = vmatprep.subr.mxu0 0.0
        %1455 = vmatpush1.msra.mxu0 0.0
        %1456 = vmatprep.subr.mxu0 0.0
        %1457 = vmatpush1.msra.mxu0 0.0
        %1458 = vmatprep.subr.mxu0 0.0
        %1459 = vmatpush1.msra.mxu0 0.0
        %1460 = vmatprep.subr.mxu0 0.0
        %1461 = vmatpush1.msra.mxu0 0.0
        %1462 = vmatprep.subr.mxu0 0.0
        %1463 = vmatpush1.msra.mxu0 0.0
        %1464 = vmatprep.subr.mxu0 0.0
        %1465 = vmatpush1.msra.mxu0 0.0
        %1466 = vmatprep.subr.mxu0 0.0
        %1467 = vmatpush1.msra.mxu0 0.0
        %1468 = vmatprep.subr.mxu0 0.0
        %1469 = vmatpush1.msra.mxu0 0.0
        %1470 = vmatprep.subr.mxu0 0.0
        %1471 = vmatpush1.msra.mxu0 0.0
        %1472 = vmatprep.subr.mxu0 0.0
        %1473 = vmatpush1.msra.mxu0 0.0
        %1474 = vmatprep.subr.mxu0 0.0
        %1475 = vmatpush1.msra.mxu0 0.0
        %1476 = vmatprep.subr.mxu0 0.0
        %1477 = vmatpush1.msra.mxu0 0.0
        %1478 = vmatprep.subr.mxu0 0.0
        %1479 = vmatpush1.msra.mxu0 0.0
        %1480 = vmatprep.mubr.f32.mxu0 0.0
        %1481 = vmatmul.mubr.f32.gmra.mrb[0].mxu0 %v1414
        %v1482 = vpop.f32.mrb[0].mxu0
        %v1483 = vadd.f32 0.0, %v1482
        %v1484 = vpop.f32.mrb[0].mxu0
        %v1485 = vadd.f32 0.0, %v1484
        %1486 = vdwg.mxu0
        %v1487 = vadd.f32 %v807, %v1483
        %v1488 = vadd.f32 %v809, %v1485
        %s1489 = scalar_lea.vmem [#allocation4], 64
        %v1490 = vld [vmem:[%s1489] sm:$0xff]
        %1491 = vrot.lane.b32.xlu0 %v811, 111
        %v1492 = vpop.permute.xlu0 %1491
        %1493 = vrot.lane.b32.xlu0 %v812, 111
        %v1494 = vpop.permute.xlu0 %1493
        %1495 = vrot.lane.b32.xlu0 %v813, 111
        %v1496 = vpop.permute.xlu0 %1495
        %1497 = vrot.lane.b32.xlu0 %v814, 111
        %v1498 = vpop.permute.xlu0 %1497
        %1499 = vrot.lane.b32.xlu0 %v815, 111
        %v1500 = vpop.permute.xlu0 %1499
        %1501 = vrot.lane.b32.xlu0 %v816, 111
        %v1502 = vpop.permute.xlu0 %1501
        %1503 = vrot.lane.b32.xlu0 %v817, 111
        %v1504 = vpop.permute.xlu0 %1503
        %1505 = vrot.lane.b32.xlu0 %v818, 111
        %v1506 = vpop.permute.xlu0 %1505
        %1507 = vrot.lane.b32.xlu0 %v819, 111
        %v1508 = vpop.permute.xlu0 %1507
        %1509 = vrot.lane.b32.xlu0 %v820, 111
        %v1510 = vpop.permute.xlu0 %1509
        %1511 = vrot.lane.b32.xlu0 %v821, 111
        %v1512 = vpop.permute.xlu0 %1511
        %1513 = vrot.lane.b32.xlu0 %v822, 111
        %v1514 = vpop.permute.xlu0 %1513
        %1515 = vrot.lane.b32.xlu0 %v823, 111
        %v1516 = vpop.permute.xlu0 %1515
        %1517 = vrot.lane.b32.xlu0 %v824, 111
        %v1518 = vpop.permute.xlu0 %1517
        %1519 = vrot.lane.b32.xlu0 %v825, 111
        %v1520 = vpop.permute.xlu0 %1519
        %1521 = vrot.lane.b32.xlu0 %v826, 111
        %v1522 = vpop.permute.xlu0 %1521
        %1523 = vrot.lane.b32.xlu0 %v827, 111
        %v1524 = vpop.permute.xlu0 %1523
        %1525 = vrot.lane.b32.xlu0 %v828, 111
        %v1526 = vpop.permute.xlu0 %1525
        %1527 = vrot.lane.b32.xlu0 %v829, 111
        %v1528 = vpop.permute.xlu0 %1527
        %1529 = vrot.lane.b32.xlu0 %v830, 111
        %v1530 = vpop.permute.xlu0 %1529
        %1531 = vrot.lane.b32.xlu0 %v831, 111
        %v1532 = vpop.permute.xlu0 %1531
        %1533 = vrot.lane.b32.xlu0 %v832, 111
        %v1534 = vpop.permute.xlu0 %1533
        %1535 = vrot.lane.b32.xlu0 %v833, 111
        %v1536 = vpop.permute.xlu0 %1535
        %1537 = vrot.lane.b32.xlu0 %v834, 111
        %v1538 = vpop.permute.xlu0 %1537
        %vm1539 = vcmask 908288
        %v1540 = vsel %vm1539, %v1492, %v1494
        %v1541 = vsel %vm1539, %v1494, %v1496
        %v1542 = vsel %vm1539, %v1498, %v1500
        %v1543 = vsel %vm1539, %v1500, %v1502
        %v1544 = vsel %vm1539, %v1504, %v1506
        %v1545 = vsel %vm1539, %v1506, %v1508
        %v1546 = vsel %vm1539, %v1510, %v1512
        %v1547 = vsel %vm1539, %v1512, %v1514
        %v1548 = vsel %vm1539, %v1516, %v1518
        %v1549 = vsel %vm1539, %v1518, %v1520
        %v1550 = vsel %vm1539, %v1522, %v1524
        %v1551 = vsel %vm1539, %v1524, %v1526
        %v1552 = vsel %vm1539, %v1528, %v1530
        %v1553 = vsel %vm1539, %v1530, %v1532
        %v1554 = vsel %vm1539, %v1534, %v1536
        %v1555 = vsel %vm1539, %v1536, %v1538
        %v1573 = vsel %vm350, %v1490, 0
        %1575 = vmatprep.subr.mxu0 %v1541
        %1576 = vmatpush1.msra.mxu0 %v1540
        %1577 = vmatprep.subr.mxu0 %v1543
        %1578 = vmatpush1.msra.mxu0 %v1542
        %1579 = vmatprep.subr.mxu0 %v1545
        %1580 = vmatpush1.msra.mxu0 %v1544
        %1581 = vmatprep.subr.mxu0 %v1547
        %1582 = vmatpush1.msra.mxu0 %v1546
        %1583 = vmatprep.subr.mxu0 %v1549
        %1584 = vmatpush1.msra.mxu0 %v1548
        %1585 = vmatprep.subr.mxu0 %v1551
        %1586 = vmatpush1.msra.mxu0 %v1550
        %1587 = vmatprep.subr.mxu0 %v1553
        %1588 = vmatpush1.msra.mxu0 %v1552
        %1589 = vmatprep.subr.mxu0 %v1555
        %1590 = vmatpush1.msra.mxu0 %v1554
        %1591 = vmatprep.subr.mxu0 0.0
        %1592 = vmatpush1.msra.mxu0 0.0
        %1593 = vmatprep.subr.mxu0 0.0
        %1594 = vmatpush1.msra.mxu0 0.0
        %1595 = vmatprep.subr.mxu0 0.0
        %1596 = vmatpush1.msra.mxu0 0.0
        %1597 = vmatprep.subr.mxu0 0.0
        %1598 = vmatpush1.msra.mxu0 0.0
        %1599 = vmatprep.subr.mxu0 0.0
        %1600 = vmatpush1.msra.mxu0 0.0
        %1601 = vmatprep.subr.mxu0 0.0
        %1602 = vmatpush1.msra.mxu0 0.0
        %1603 = vmatprep.subr.mxu0 0.0
        %1604 = vmatpush1.msra.mxu0 0.0
        %1605 = vmatprep.subr.mxu0 0.0
        %1606 = vmatpush1.msra.mxu0 0.0
        %1607 = vmatprep.subr.mxu0 0.0
        %1608 = vmatpush1.msra.mxu0 0.0
        %1609 = vmatprep.subr.mxu0 0.0
        %1610 = vmatpush1.msra.mxu0 0.0
        %1611 = vmatprep.subr.mxu0 0.0
        %1612 = vmatpush1.msra.mxu0 0.0
        %1613 = vmatprep.subr.mxu0 0.0
        %1614 = vmatpush1.msra.mxu0 0.0
        %1615 = vmatprep.subr.mxu0 0.0
        %1616 = vmatpush1.msra.mxu0 0.0
        %1617 = vmatprep.subr.mxu0 0.0
        %1618 = vmatpush1.msra.mxu0 0.0
        %1619 = vmatprep.subr.mxu0 0.0
        %1620 = vmatpush1.msra.mxu0 0.0
        %1621 = vmatprep.subr.mxu0 0.0
        %1622 = vmatpush1.msra.mxu0 0.0
        %1623 = vmatprep.subr.mxu0 0.0
        %1624 = vmatpush1.msra.mxu0 0.0
        %1625 = vmatprep.subr.mxu0 0.0
        %1626 = vmatpush1.msra.mxu0 0.0
        %1627 = vmatprep.subr.mxu0 0.0
        %1628 = vmatpush1.msra.mxu0 0.0
        %1629 = vmatprep.subr.mxu0 0.0
        %1630 = vmatpush1.msra.mxu0 0.0
        %1631 = vmatprep.subr.mxu0 0.0
        %1632 = vmatpush1.msra.mxu0 0.0
        %1633 = vmatprep.subr.mxu0 0.0
        %1634 = vmatpush1.msra.mxu0 0.0
        %1635 = vmatprep.subr.mxu0 0.0
        %1636 = vmatpush1.msra.mxu0 0.0
        %1637 = vmatprep.subr.mxu0 0.0
        %1638 = vmatpush1.msra.mxu0 0.0
        %1639 = vmatprep.mubr.f32.mxu0 0.0
        %1640 = vmatmul.mubr.f32.gmra.mrb[0].mxu0 %v1573
        %v1641 = vpop.f32.mrb[0].mxu0
        %v1642 = vadd.f32 0.0, %v1641
        %v1643 = vpop.f32.mrb[0].mxu0
        %v1644 = vadd.f32 0.0, %v1643
        %1645 = vdwg.mxu0
        %v1646 = vadd.f32 %v1167, %v1642
        %v1647 = vadd.f32 %v1169, %v1644
        %v1648 = vadd.f32 %v208, %v1487
        %v1649 = vadd.f32 %v208, %v1488
        %v1650 = vmul.f32 %v1328, %v196
        %v1651 = vmul.f32 %v1329, %v197
        %v1652 = vadd.f32 %v1648, %v1650
        %v1653 = vadd.f32 %v1649, %v1651
        %v1654 = vmul.f32 %v1646, %v202
        %v1655 = vmul.f32 %v1647, %v203
        %v1656 = vadd.f32 %v1652, %v1654
        %v1657 = vadd.f32 %v1653, %v1655
        %v1660 = vcombine.low %v1656, %v1657
        %1662 = vst [vmem:[%s139] sm:$0x77] %v1660
        %p1663 = scmp.lt.s32.totalorder %s15, 1
        %s1664 = scalar_select %p1663, %s15, 1
        %s1665 = smul.addr %s1664, 2
        %s1666 = smul.addr %s1665, 4
        %s1667 = scalar_lea.vmem %s3, %s1666
        // Predicated region
        $region33: #{tpu_custom_call.1} parent=27 // pred_check
          %p1668 = pneg %p75
        $region34: #{tpu_custom_call.1} parent=27 // pred_check_branch
          %1670 = sbr.rel (%p1668) target = $region36
        $region35: #{tpu_custom_call.1} parent=27 // pred_region
          _
        $region36: #{tpu_custom_call.1} parent=27 // pred_fallthru
          _
      $region28: #{tpu_custom_call.1} parent=5 // pred_fallthru
        _
      %p1671 = scmp.le.s32.totalorder 2, %s10
      // Predicated region
      $region37: #{tpu_custom_call.1} parent=5 // pred_check
        %p1672 = pneg %p1671
      $region38: #{tpu_custom_call.1} parent=5 // pred_check_branch
        %1674 = sbr.rel (%p1672) target = $region40
      $region39: #{tpu_custom_call.1} parent=5 // pred_region
        %s1675 = ssub.s32 %s10, 2
        // Predicated region
        $region41: #{tpu_custom_call.1} parent=39 // pred_check
          %p1676 = pneg %p81
        $region42: #{tpu_custom_call.1} parent=39 // pred_check_branch
          %1678 = sbr.rel (%p1676) target = $region44
        $region43: #{tpu_custom_call.1} parent=39 // pred_region
          %p1679 = scmp.lt.s32.totalorder %s16, 1
          %s1680 = scalar_select %p1679, %s16, 1
          %s1681 = smul.addr %s1680, 2
          %s1682 = smul.addr %s1681, 4
          %s1683 = scalar_lea.vmem %s3, %s1682
        $region44: #{tpu_custom_call.1} parent=39 // pred_fallthru
          _
      $region40: #{tpu_custom_call.1} parent=5 // pred_fallthru
        _
    $region6: #{tpu_custom_call.1} parent=1 // loop_footer
      %s14 = sadd.s32 1, %s10
    $region7: #{tpu_custom_call.1} parent=1 // loop_footer_branch
      %9 = sbr.rel target = $region3
    $region8: #{tpu_custom_call.1} parent=1 // loop_exit
      _
    %1684 = vsyncpa [#allocation5], 1
    %s1685 = scalar_lea.sflag [#allocation5], 1
    %1686 = vsyncpa %s1685, 1
  %1687 = vsyncmov [#allocation3]
  %s1688 = vpop.sfrf %1687
  %p1689 = scmp.eq.s32.totalorder %s1688, 0
  %p1690 = pneg %p1689
  %1692 = shalt.err (%p1690)

</llo_original>
